<compile_context>
chip_gen: v5e
topology: v5e:2x2
jax: 0.10.0
libtpu: 0.0.40
codegen_flags: <defaults>
</compile_context>

<pallas_src>
import functools

import jax
import jax.numpy as jnp
from jax import lax
from jax.experimental import pallas as pl
from jax.experimental.pallas import tpu as pltpu


# ----------------------------------------------------------------------------
# Fused kernel: one grid step = one (batch, row-strip) of th_out output rows.
# ----------------------------------------------------------------------------
def _res_down_kernel(xm_ref, xh_ref, a_ref, w2_ref, b3_ref, bz_ref, o_ref,
                     *, th_out, Wo, Cin, Cout):
    Hin = 2 * th_out              # input rows covered by this strip
    Wop = Wo + 1                  # width pairs incl. one garbage pair (padded width / 2)
    L = Hin * Wop                 # flattened conv-output rows (row, pair)
    M = th_out * Wo               # output pixels of this strip
    C2 = 2 * Cout
    C3 = 3 * Cout

    # ---- assemble the padded strip in VMEM: [1 top-halo | Hin main | 1 bottom | 1 dont-care]
    xm = xm_ref[0].reshape(L, 2 * Cin)               # (Hin*Wop, 2Cin)    bf16
    xh = xh_ref[0].reshape(3 * Wop, 2 * Cin)         # top / bottom / dont-care rows
    xflat = jnp.concatenate([xh[:Wop], xm, xh[Wop:]], axis=0)   # ((Hin+3)*Wop, 2Cin)

    # ---- 3x3 conv + folded avgpool/1x1 residual: 6 shifted flat-slab matmuls with banded
    #      (2Cin, 3Cout) weights.  acc lanes: [even cols | odd cols | per-row residual].
    acc = None
    for dy in range(3):
        for dp in range(2):
            off = dy * Wop + dp
            part = jnp.dot(xflat[off:off + L, :], a_ref[2 * dy + dp],
                           preferred_element_type=jnp.float32)
            acc = part if acc is None else acc + part           # (L, 3Cout) f32

    # ---- bias + ReLU + per-pixel L2 normalize on the conv lanes only (residual lanes pass
    #      through untouched; rsqrt runs on the EUP).
    y = acc + b3_ref[...]                                       # residual lanes get +0
    lane = lax.broadcasted_iota(jnp.int32, (L, C3), 1)
    y = jnp.where(lane < C2, jnp.maximum(y, 0.0), y)
    ye = y[:, :Cout]
    yo = y[:, Cout:C2]
    # y / max(||y||, 1e-12)  ==  y * rsqrt(max(sum(y^2), 1e-24))
    rs_e = lax.rsqrt(jnp.maximum(jnp.sum(ye * ye, axis=-1, keepdims=True), 1e-24))
    rs_o = lax.rsqrt(jnp.maximum(jnp.sum(yo * yo, axis=-1, keepdims=True), 1e-24))
    scale = jnp.where(lane < Cout, rs_e, jnp.where(lane < C2, rs_o, 1.0))
    u = (y * scale).astype(jnp.bfloat16)                        # (L, 3Cout)

    # ---- 2x2 / stride-2 conv + residual row-sum in two matmuls.
    #      w2_ref[i] = [w2(i,0); w2(i,1); I]  -> identity block sums the residual partials.
    u4 = u.reshape(th_out, 2, Wop, C3)
    z = (jnp.dot(u4[:, 0, :Wo, :].reshape(M, C3), w2_ref[0],
                 preferred_element_type=jnp.float32)
         + jnp.dot(u4[:, 1, :Wo, :].reshape(M, C3), w2_ref[1],
                   preferred_element_type=jnp.float32))          # (M, Cout)
    z = z + bz_ref[...]                                          # b2 + br

    # ---- lane-dense channel-major store (Cout, M); XLU transpose, not a masked vst.
    o_ref[0] = z.T.astype(o_ref.dtype)


# ----------------------------------------------------------------------------
# Generation-aware strip sizing.
# ----------------------------------------------------------------------------
def _vmem_capacity_bytes():
    try:
        cap = int(getattr(pltpu.get_tpu_info(), "vmem_capacity_bytes", 0))
        if cap > 0:
            return cap
    except Exception:
        pass
    return 128 << 20        # conservative default (v5e/v6e)


def _strip_vmem_bytes(th_out, Wo, Cin, Cout):
    """Conservative per-grid-step working set (bytes) for the fused kernel."""
    Hin, Wop = 2 * th_out, Wo + 1
    Hs, L, M = Hin + 3, 2 * th_out * (Wo + 1), th_out * Wo
    in_blk = Hs * Wop * 2 * Cin * 2                      # main + halo blocks (bf16)
    out_blk = Cout * M * 4                               # channel-major output block (f32)
    wts = (6 * 2 * Cin * 3 * Cout + 2 * 3 * Cout * Cout) * 2
    tmp = (Hs * Wop * 2 * Cin * 2                        # assembled strip (bf16)
           + 4 * L * 3 * Cout * 4                        # acc / y / scale temporaries (f32)
           + L * 3 * Cout * 2                            # u (bf16)
           + 3 * M * 3 * Cout * 4)                       # sliced slabs + z partials
    return 2 * (in_blk + out_blk + wts) + tmp            # 2x = double buffering


def _pick_th_out(N, Ho, Wo, Cin, Cout, budget_bytes):
    divisors = [d for d in range(1, Ho + 1) if Ho % d == 0]
    feasible = [d for d in divisors
                if _strip_vmem_bytes(d, Wo, Cin, Cout) <= budget_bytes] or [1]
    best = max(feasible)
    # Prefer an even total grid (keeps both v7x TensorCores busy) if it costs < 2x the strips.
    if (N * (Ho // best)) % 2 == 1:
        even = [d for d in feasible if (N * (Ho // d)) % 2 == 0 and 2 * d >= best]
        if even:
            best = max(even)
    return best


# ----------------------------------------------------------------------------
# Wrapper: layout prep (pad, column-pair, halo) + weight packing + pallas_call.
# ----------------------------------------------------------------------------
@jax.jit
def res_down_block(x_nchw, w3, b3, w2, b2, wr, br):
    """Pallas implementation of ResDownBlock.forward (NCHW in, NCHW out, ReLU activation)."""
    N, Cin, H, W = x_nchw.shape
    Cout = w3.shape[0]
    assert H % 2 == 0 and W % 2 == 0, "ResDownBlock expects even spatial dims"
    Ho, Wo = H // 2, W // 2
    Wop = Wo + 1

    cap = _vmem_capacity_bytes()
    budget = min(22 << 20, cap // 4)                     # ~22 MiB on 128-MiB parts, ~16 MiB v7x
    vmem_limit = int(min(64 << 20, (cap * 3) // 4))      # 64 MiB (v5e/v6e), 48 MiB (v7x)
    th_out = _pick_th_out(N, Ho, Wo, Cin, Cout, budget)
    S = Ho // th_out
    Hin = 2 * th_out
    G = N * S
    M = th_out * Wo

    # ---- input layout: NHWC, left/right zero pad, adjacent columns paired on lanes (bf16).
    x = jnp.transpose(x_nchw, (0, 2, 3, 1)).astype(jnp.bfloat16)        # (N, H, W, Cin)
    xlr = jnp.pad(x, ((0, 0), (0, 0), (1, 1), (0, 0)))                  # (N, H, W+2, Cin)
    xstrips = xlr.reshape(N, S, Hin, Wop, 2 * Cin)                      # free reshape
    # 3-row halo per strip: [row above | row below | dont-care]; zeros at the image borders.
    z1 = jnp.zeros((N, 1, 1, Wop, 2 * Cin), jnp.bfloat16)
    top = jnp.concatenate([z1, xstrips[:, :-1, Hin - 1:Hin]], axis=1)   # (N, S, 1, ...)
    bot = jnp.concatenate([xstrips[:, 1:, 0:1], z1], axis=1)            # (N, S, 1, ...)
    dc = jnp.zeros((N, S, 1, Wop, 2 * Cin), jnp.bfloat16)               # slice-validity row
    xhalo = jnp.concatenate([top, bot, dc], axis=2).reshape(G, 3, Wop, 2 * Cin)
    xmain = xstrips.reshape(G, Hin, Wop, 2 * Cin)

    # ---- 3x3 weights + folded avgpool/1x1 residual -> 6 banded (2Cin, 3Cout) tap matrices.
    w3m = jnp.transpose(w3, (2, 3, 1, 0)).astype(jnp.float32)           # (3, 3, Cin, Cout)
    wrT = jnp.transpose(wr[:, :, 0, 0]).astype(jnp.float32)             # (Cin, Cout)
    Z = jnp.zeros((Cin, Cout), jnp.float32)
    a_list = []
    for dy in range(3):
        W0, W1, W2 = w3m[dy, 0], w3m[dy, 1], w3m[dy, 2]
        R = 0.25 * wrT if dy == 1 else Z      # avg_pool2d folded into the 1x1 weight
        a_list.append(jnp.concatenate(                                   # tap (dy, dp=0)
            [jnp.concatenate([W0, Z, Z], axis=1),
             jnp.concatenate([W1, W0, R], axis=1)], axis=0))
        a_list.append(jnp.concatenate(                                   # tap (dy, dp=1)
            [jnp.concatenate([W2, W1, R], axis=1),
             jnp.concatenate([Z, W2, Z], axis=1)], axis=0))
    a_all = jnp.stack(a_list, axis=0).astype(jnp.bfloat16)              # (6, 2Cin, 3Cout)

    # ---- 2x2/s2 conv weights + identity block that sums the residual partials.
    w2m = jnp.transpose(w2, (2, 3, 1, 0)).astype(jnp.float32)           # (2, 2, Cout, Cout)
    eye = jnp.eye(Cout, dtype=jnp.float32)
    w2cat = jnp.stack(
        [jnp.concatenate([w2m[0, 0], w2m[0, 1], eye], axis=0),
         jnp.concatenate([w2m[1, 0], w2m[1, 1], eye], axis=0)],
        axis=0).astype(jnp.bfloat16)                                     # (2, 3Cout, Cout)

    b3row = jnp.concatenate([b3, b3, jnp.zeros((Cout,), b3.dtype)]
                            ).reshape(1, 3 * Cout).astype(jnp.float32)
    bzrow = (b2 + br).reshape(1, Cout).astype(jnp.float32)

    kernel = functools.partial(_res_down_kernel,
                               th_out=th_out, Wo=Wo, Cin=Cin, Cout=Cout)

    out_flat = pl.pallas_call(
        kernel,
        out_shape=jax.ShapeDtypeStruct((G, Cout, M), jnp.float32),
        grid_spec=pltpu.PrefetchScalarGridSpec(
            num_scalar_prefetch=0,
            grid=(G,),
            in_specs=[
                pl.BlockSpec((1, Hin, Wop, 2 * Cin), lambda i: (i, 0, 0, 0)),
                pl.BlockSpec((1, 3, Wop, 2 * Cin), lambda i: (i, 0, 0, 0)),
                pl.BlockSpec((6, 2 * Cin, 3 * Cout), lambda i: (0, 0, 0)),
                pl.BlockSpec((2, 3 * Cout, Cout), lambda i: (0, 0, 0)),
                pl.BlockSpec((1, 3 * Cout), lambda i: (0, 0)),
                pl.BlockSpec((1, Cout), lambda i: (0, 0)),
            ],
            out_specs=pl.BlockSpec((1, Cout, M), lambda i: (i, 0, 0)),
        ),
        compiler_params=pltpu.CompilerParams(
            dimension_semantics=("parallel",),
            vmem_limit_bytes=vmem_limit),
    )(xmain, xhalo, a_all, w2cat, b3row, bzrow)

    out = out_flat.reshape(N, S, Cout, th_out, Wo)
    out = jnp.transpose(out, (0, 2, 1, 3, 4)).reshape(N, Cout, Ho, Wo)
    return out


# ----------------------------------------------------------------------------
# Pure-JAX reference (mirrors the PyTorch forward exactly) for validation.
# ----------------------------------------------------------------------------
def reference(x, w3, b3, w2, b2, wr, br):
    dn = ("NCHW", "OIHW", "NCHW")
    y = lax.conv_general_dilated(x, w3, (1, 1), ((1, 1), (1, 1)), dimension_numbers=dn)
    y = jnp.maximum(y + b3[None, :, None, None], 0.0)                   # ReLU
    denom = jnp.maximum(jnp.sqrt(jnp.sum(y * y, axis=1, keepdims=True)), 1e-12)
    y = y / denom                                                       # F.normalize (dim=1)
    z = lax.conv_general_dilated(y, w2, (2, 2), "VALID", dimension_numbers=dn)
    z = z + b2[None, :, None, None]
    N, C, H, W = x.shape
    down = x.reshape(N, C, H // 2, 2, W // 2, 2).mean(axis=(3, 5))      # avg_pool2d(2, 2)
    r = lax.conv_general_dilated(down, wr, (1, 1), "VALID", dimension_numbers=dn)
    return z + r + br[None, :, None, None]


if __name__ == "__main__":
    N, Cin, Cout, H, W = 2, 4, 8, 16, 16
    key = jax.random.PRNGKey(0)
    k = jax.random.split(key, 7)

    # Deterministic synthetic parameters (shapes from ResDownBlock.__init__).
    x = jax.random.normal(k[0], (N, Cin, H, W), jnp.float32)
    w3 = jax.random.normal(k[1], (Cout, Cin, 3, 3), jnp.float32) * 0.2   # fattener
    b3 = jax.random.normal(k[2], (Cout,), jnp.float32) * 0.1
    wr = jax.random.normal(k[3], (Cout, Cin, 1, 1), jnp.float32) * 0.2   # resfat
    br = jax.random.normal(k[4], (Cout,), jnp.float32) * 0.1
    w2 = jax.random.normal(k[5], (Cout, Cout, 2, 2), jnp.float32) * 0.2  # conv
    b2 = jax.random.normal(k[6], (Cout,), jnp.float32) * 0.1

    out = jax.block_until_ready(res_down_block(x, w3, b3, w2, b2, wr, br))
    assert out.shape == (N, Cout, H // 2, W // 2), out.shape

    # Reference with the kernel's bf16 MXU-operand rounding applied (accumulation stays f32),
    # so the self-check stays tight without penalizing the bf16 fast path.
    q = lambda a: a.astype(jnp.bfloat16).astype(jnp.float32)
    ref = reference(q(x), q(w3), b3, q(w2), b2, q(wr), br)
    max_err = float(jnp.max(jnp.abs(out - ref)))
    assert max_err < 3e-2, f"mismatch vs reference: {max_err}"

    print("KERNEL_OK")
</pallas_src>

<mosaic_0001>
module attributes {stable_mosaic.version = 11 : i64} {
  func.func @_res_down_kernel(%arg0: i32, %arg1: memref<1x16x9x8xbf16, #tpu.memory_space<vmem>>, %arg2: memref<1x3x9x8xbf16, #tpu.memory_space<vmem>>, %arg3: memref<6x8x24xbf16, #tpu.memory_space<vmem>>, %arg4: memref<2x24x8xbf16, #tpu.memory_space<vmem>>, %arg5: memref<1x24xf32, #tpu.memory_space<vmem>>, %arg6: memref<1x8xf32, #tpu.memory_space<vmem>>, %arg7: memref<1x8x64xf32, #tpu.memory_space<vmem>>) attributes {dimension_semantics = [#tpu.dimension_semantics<parallel>], iteration_bounds = array<i64: 2>, scalar_prefetch = 0 : i64, scratch_operands = 0 : i64, tpu.core_type = #tpu.core_type<tc>, window_params = [{transform_indices = @transform_0, window_bounds = array<i64: 1, 16, 9, 8>}, {transform_indices = @transform_1, window_bounds = array<i64: 1, 3, 9, 8>}, {pipeline_mode = #tpu.pipeline_mode<synchronous>, transform_indices = @transform_2, window_bounds = array<i64: 6, 8, 24>}, {pipeline_mode = #tpu.pipeline_mode<synchronous>, transform_indices = @transform_3, window_bounds = array<i64: 2, 24, 8>}, {pipeline_mode = #tpu.pipeline_mode<synchronous>, transform_indices = @transform_4, window_bounds = array<i64: 1, 24>}, {pipeline_mode = #tpu.pipeline_mode<synchronous>, transform_indices = @transform_5, window_bounds = array<i64: 1, 8>}, {transform_indices = @transform_6, window_bounds = array<i64: 1, 8, 64>}]} {
    %c0 = arith.constant 0 : index
    %c0_0 = arith.constant 0 : index
    %c0_1 = arith.constant 0 : index
    %c0_2 = arith.constant 0 : index
    %0 = vector.load %arg1[%c0, %c0_0, %c0_1, %c0_2] : memref<1x16x9x8xbf16, #tpu.memory_space<vmem>>, vector<1x16x9x8xbf16>
    %1 = vector.shape_cast %0 : vector<1x16x9x8xbf16> to vector<16x9x8xbf16>
    %2 = vector.shape_cast %1 : vector<16x9x8xbf16> to vector<144x8xbf16>
    %c0_3 = arith.constant 0 : index
    %c0_4 = arith.constant 0 : index
    %c0_5 = arith.constant 0 : index
    %c0_6 = arith.constant 0 : index
    %3 = vector.load %arg2[%c0_3, %c0_4, %c0_5, %c0_6] : memref<1x3x9x8xbf16, #tpu.memory_space<vmem>>, vector<1x3x9x8xbf16>
    %4 = vector.shape_cast %3 : vector<1x3x9x8xbf16> to vector<3x9x8xbf16>
    %5 = vector.shape_cast %4 : vector<3x9x8xbf16> to vector<27x8xbf16>
    %6 = vector.extract_strided_slice %5 {offsets = [0, 0], sizes = [9, 8], strides = [1, 1]} : vector<27x8xbf16> to vector<9x8xbf16>
    %7 = vector.extract_strided_slice %5 {offsets = [9, 0], sizes = [18, 8], strides = [1, 1]} : vector<27x8xbf16> to vector<18x8xbf16>
    %8 = tpu.concatenate %6, %2, %7 in 0 : vector<9x8xbf16>, vector<144x8xbf16>, vector<18x8xbf16> -> vector<171x8xbf16>
    %9 = vector.extract_strided_slice %8 {offsets = [0, 0], sizes = [144, 8], strides = [1, 1]} : vector<171x8xbf16> to vector<144x8xbf16>
    %c0_7 = arith.constant 0 : index
    %c0_8 = arith.constant 0 : index
    %c0_9 = arith.constant 0 : index
    %10 = vector.load %arg3[%c0_7, %c0_8, %c0_9] : memref<6x8x24xbf16, #tpu.memory_space<vmem>>, vector<1x8x24xbf16>
    %11 = vector.shape_cast %10 : vector<1x8x24xbf16> to vector<8x24xbf16>
    %cst = arith.constant dense<0.000000e+00> : vector<144x24xf32>
    %12 = tpu.matmul %9, %11, %cst {dimension_numbers = #tpu.dot_dimension_numbers<[1], [0], [0], [1], [0, 0, 1, 1], [], []>} : vector<144x8xbf16>, vector<8x24xbf16>, vector<144x24xf32> -> vector<144x24xf32>
    %13 = vector.extract_strided_slice %8 {offsets = [1, 0], sizes = [144, 8], strides = [1, 1]} : vector<171x8xbf16> to vector<144x8xbf16>
    %c1 = arith.constant 1 : index
    %c0_10 = arith.constant 0 : index
    %c0_11 = arith.constant 0 : index
    %14 = vector.load %arg3[%c1, %c0_10, %c0_11] : memref<6x8x24xbf16, #tpu.memory_space<vmem>>, vector<1x8x24xbf16>
    %15 = vector.shape_cast %14 : vector<1x8x24xbf16> to vector<8x24xbf16>
    %cst_12 = arith.constant dense<0.000000e+00> : vector<144x24xf32>
    %16 = tpu.matmul %13, %15, %cst_12 {dimension_numbers = #tpu.dot_dimension_numbers<[1], [0], [0], [1], [0, 0, 1, 1], [], []>} : vector<144x8xbf16>, vector<8x24xbf16>, vector<144x24xf32> -> vector<144x24xf32>
    %17 = arith.addf %12, %16 : vector<144x24xf32>
    %18 = vector.extract_strided_slice %8 {offsets = [9, 0], sizes = [144, 8], strides = [1, 1]} : vector<171x8xbf16> to vector<144x8xbf16>
    %c2 = arith.constant 2 : index
    %c0_13 = arith.constant 0 : index
    %c0_14 = arith.constant 0 : index
    %19 = vector.load %arg3[%c2, %c0_13, %c0_14] : memref<6x8x24xbf16, #tpu.memory_space<vmem>>, vector<1x8x24xbf16>
    %20 = vector.shape_cast %19 : vector<1x8x24xbf16> to vector<8x24xbf16>
    %cst_15 = arith.constant dense<0.000000e+00> : vector<144x24xf32>
    %21 = tpu.matmul %18, %20, %cst_15 {dimension_numbers = #tpu.dot_dimension_numbers<[1], [0], [0], [1], [0, 0, 1, 1], [], []>} : vector<144x8xbf16>, vector<8x24xbf16>, vector<144x24xf32> -> vector<144x24xf32>
    %22 = arith.addf %17, %21 : vector<144x24xf32>
    %23 = vector.extract_strided_slice %8 {offsets = [10, 0], sizes = [144, 8], strides = [1, 1]} : vector<171x8xbf16> to vector<144x8xbf16>
    %c3 = arith.constant 3 : index
    %c0_16 = arith.constant 0 : index
    %c0_17 = arith.constant 0 : index
    %24 = vector.load %arg3[%c3, %c0_16, %c0_17] : memref<6x8x24xbf16, #tpu.memory_space<vmem>>, vector<1x8x24xbf16>
    %25 = vector.shape_cast %24 : vector<1x8x24xbf16> to vector<8x24xbf16>
    %cst_18 = arith.constant dense<0.000000e+00> : vector<144x24xf32>
    %26 = tpu.matmul %23, %25, %cst_18 {dimension_numbers = #tpu.dot_dimension_numbers<[1], [0], [0], [1], [0, 0, 1, 1], [], []>} : vector<144x8xbf16>, vector<8x24xbf16>, vector<144x24xf32> -> vector<144x24xf32>
    %27 = arith.addf %22, %26 : vector<144x24xf32>
    %28 = vector.extract_strided_slice %8 {offsets = [18, 0], sizes = [144, 8], strides = [1, 1]} : vector<171x8xbf16> to vector<144x8xbf16>
    %c4 = arith.constant 4 : index
    %c0_19 = arith.constant 0 : index
    %c0_20 = arith.constant 0 : index
    %29 = vector.load %arg3[%c4, %c0_19, %c0_20] : memref<6x8x24xbf16, #tpu.memory_space<vmem>>, vector<1x8x24xbf16>
    %30 = vector.shape_cast %29 : vector<1x8x24xbf16> to vector<8x24xbf16>
    %cst_21 = arith.constant dense<0.000000e+00> : vector<144x24xf32>
    %31 = tpu.matmul %28, %30, %cst_21 {dimension_numbers = #tpu.dot_dimension_numbers<[1], [0], [0], [1], [0, 0, 1, 1], [], []>} : vector<144x8xbf16>, vector<8x24xbf16>, vector<144x24xf32> -> vector<144x24xf32>
    %32 = arith.addf %27, %31 : vector<144x24xf32>
    %33 = vector.extract_strided_slice %8 {offsets = [19, 0], sizes = [144, 8], strides = [1, 1]} : vector<171x8xbf16> to vector<144x8xbf16>
    %c5 = arith.constant 5 : index
    %c0_22 = arith.constant 0 : index
    %c0_23 = arith.constant 0 : index
    %34 = vector.load %arg3[%c5, %c0_22, %c0_23] : memref<6x8x24xbf16, #tpu.memory_space<vmem>>, vector<1x8x24xbf16>
    %35 = vector.shape_cast %34 : vector<1x8x24xbf16> to vector<8x24xbf16>
    %cst_24 = arith.constant dense<0.000000e+00> : vector<144x24xf32>
    %36 = tpu.matmul %33, %35, %cst_24 {dimension_numbers = #tpu.dot_dimension_numbers<[1], [0], [0], [1], [0, 0, 1, 1], [], []>} : vector<144x8xbf16>, vector<8x24xbf16>, vector<144x24xf32> -> vector<144x24xf32>
    %37 = arith.addf %32, %36 : vector<144x24xf32>
    %c0_25 = arith.constant 0 : index
    %c0_26 = arith.constant 0 : index
    %38 = vector.load %arg5[%c0_25, %c0_26] : memref<1x24xf32, #tpu.memory_space<vmem>>, vector<1x24xf32>
    %39 = vector.broadcast %38 : vector<1x24xf32> to vector<144x24xf32>
    %40 = arith.addf %37, %39 : vector<144x24xf32>
    %41 = tpu.iota {dimensions = array<i32: 1>} : vector<144x24xi32>
    %c16_i32 = arith.constant 16 : i32
    %42 = vector.broadcast %c16_i32 : i32 to vector<144x24xi32>
    %43 = arith.cmpi slt, %41, %42 : vector<144x24xi32>
    %cst_27 = arith.constant 0.000000e+00 : f32
    %44 = vector.broadcast %cst_27 : f32 to vector<144x24xf32>
    %45 = arith.maximumf %40, %44 : vector<144x24xf32>
    %46 = arith.select %43, %45, %40 : vector<144x24xi1>, vector<144x24xf32>
    %47 = vector.extract_strided_slice %46 {offsets = [0, 0], sizes = [144, 8], strides = [1, 1]} : vector<144x24xf32> to vector<144x8xf32>
    %48 = vector.extract_strided_slice %46 {offsets = [0, 8], sizes = [144, 8], strides = [1, 1]} : vector<144x24xf32> to vector<144x8xf32>
    %49 = arith.mulf %47, %47 : vector<144x8xf32>
    %cst_28 = arith.constant dense<0.000000e+00> : vector<144xf32>
    %50 = vector.multi_reduction <add>, %49, %cst_28 [1] : vector<144x8xf32> to vector<144xf32>
    %51 = vector.shape_cast %50 : vector<144xf32> to vector<144x1xf32>
    %cst_29 = arith.constant 1.000000e-24 : f32
    %52 = vector.broadcast %cst_29 : f32 to vector<144x1xf32>
    %53 = arith.maximumf %51, %52 : vector<144x1xf32>
    %54 = math.rsqrt %53 : vector<144x1xf32>
    %55 = arith.mulf %48, %48 : vector<144x8xf32>
    %cst_30 = arith.constant dense<0.000000e+00> : vector<144xf32>
    %56 = vector.multi_reduction <add>, %55, %cst_30 [1] : vector<144x8xf32> to vector<144xf32>
    %57 = vector.shape_cast %56 : vector<144xf32> to vector<144x1xf32>
    %cst_31 = arith.constant 1.000000e-24 : f32
    %58 = vector.broadcast %cst_31 : f32 to vector<144x1xf32>
    %59 = arith.maximumf %57, %58 : vector<144x1xf32>
    %60 = math.rsqrt %59 : vector<144x1xf32>
    %c8_i32 = arith.constant 8 : i32
    %61 = vector.broadcast %c8_i32 : i32 to vector<144x24xi32>
    %62 = arith.cmpi slt, %41, %61 : vector<144x24xi32>
    %c16_i32_32 = arith.constant 16 : i32
    %63 = vector.broadcast %c16_i32_32 : i32 to vector<144x24xi32>
    %64 = arith.cmpi slt, %41, %63 : vector<144x24xi32>
    %cst_33 = arith.constant 1.000000e+00 : f32
    %65 = vector.shape_cast %60 : vector<144x1xf32> to vector<144x1xf32>
    %66 = vector.broadcast %65 : vector<144x1xf32> to vector<144x24xf32>
    %67 = vector.broadcast %cst_33 : f32 to vector<144x24xf32>
    %68 = arith.select %64, %66, %67 : vector<144x24xi1>, vector<144x24xf32>
    %69 = vector.shape_cast %54 : vector<144x1xf32> to vector<144x1xf32>
    %70 = vector.broadcast %69 : vector<144x1xf32> to vector<144x24xf32>
    %71 = arith.select %62, %70, %68 : vector<144x24xi1>, vector<144x24xf32>
    %72 = arith.mulf %46, %71 : vector<144x24xf32>
    %73 = arith.truncf %72 : vector<144x24xf32> to vector<144x24xbf16>
    %74 = vector.shape_cast %73 : vector<144x24xbf16> to vector<8x2x9x24xbf16>
    %75 = vector.extract_strided_slice %74 {offsets = [0, 0, 0, 0], sizes = [8, 1, 8, 24], strides = [1, 1, 1, 1]} : vector<8x2x9x24xbf16> to vector<8x1x8x24xbf16>
    %76 = vector.shape_cast %75 : vector<8x1x8x24xbf16> to vector<8x8x24xbf16>
    %77 = vector.shape_cast %76 : vector<8x8x24xbf16> to vector<64x24xbf16>
    %c0_34 = arith.constant 0 : index
    %c0_35 = arith.constant 0 : index
    %c0_36 = arith.constant 0 : index
    %78 = vector.load %arg4[%c0_34, %c0_35, %c0_36] : memref<2x24x8xbf16, #tpu.memory_space<vmem>>, vector<1x24x8xbf16>
    %79 = vector.shape_cast %78 : vector<1x24x8xbf16> to vector<24x8xbf16>
    %cst_37 = arith.constant dense<0.000000e+00> : vector<64x8xf32>
    %80 = tpu.matmul %77, %79, %cst_37 {dimension_numbers = #tpu.dot_dimension_numbers<[1], [0], [0], [1], [0, 0, 1, 1], [], []>} : vector<64x24xbf16>, vector<24x8xbf16>, vector<64x8xf32> -> vector<64x8xf32>
    %81 = vector.extract_strided_slice %74 {offsets = [0, 1, 0, 0], sizes = [8, 1, 8, 24], strides = [1, 1, 1, 1]} : vector<8x2x9x24xbf16> to vector<8x1x8x24xbf16>
    %82 = vector.shape_cast %81 : vector<8x1x8x24xbf16> to vector<8x8x24xbf16>
    %83 = vector.shape_cast %82 : vector<8x8x24xbf16> to vector<64x24xbf16>
    %c1_38 = arith.constant 1 : index
    %c0_39 = arith.constant 0 : index
    %c0_40 = arith.constant 0 : index
    %84 = vector.load %arg4[%c1_38, %c0_39, %c0_40] : memref<2x24x8xbf16, #tpu.memory_space<vmem>>, vector<1x24x8xbf16>
    %85 = vector.shape_cast %84 : vector<1x24x8xbf16> to vector<24x8xbf16>
    %cst_41 = arith.constant dense<0.000000e+00> : vector<64x8xf32>
    %86 = tpu.matmul %83, %85, %cst_41 {dimension_numbers = #tpu.dot_dimension_numbers<[1], [0], [0], [1], [0, 0, 1, 1], [], []>} : vector<64x24xbf16>, vector<24x8xbf16>, vector<64x8xf32> -> vector<64x8xf32>
    %87 = arith.addf %80, %86 : vector<64x8xf32>
    %c0_42 = arith.constant 0 : index
    %c0_43 = arith.constant 0 : index
    %88 = vector.load %arg6[%c0_42, %c0_43] : memref<1x8xf32, #tpu.memory_space<vmem>>, vector<1x8xf32>
    %89 = vector.broadcast %88 : vector<1x8xf32> to vector<64x8xf32>
    %90 = arith.addf %87, %89 : vector<64x8xf32>
    %91 = tpu.transpose %90, [1, 0] : vector<64x8xf32> -> vector<8x64xf32>
    %c0_44 = arith.constant 0 : index
    %c0_45 = arith.constant 0 : index
    %c0_46 = arith.constant 0 : index
    %92 = vector.load %arg7[%c0_44, %c0_45, %c0_46] : memref<1x8x64xf32, #tpu.memory_space<vmem>>, vector<1x8x64xf32>
    %93 = vector.shape_cast %92 : vector<1x8x64xf32> to vector<8x64xf32>
    %94 = vector.shape_cast %91 : vector<8x64xf32> to vector<1x8x64xf32>
    tpu.vector_store %arg7[%c0_44, %c0_45, %c0_46], %94 {strides = array<i32>} : memref<1x8x64xf32, #tpu.memory_space<vmem>>, vector<1x8x64xf32>,
    return
  }
  func.func @transform_0(%arg0: i32) -> (i32, i32, i32, i32) {
    %c0_i32 = arith.constant 0 : i32
    %c0_i32_0 = arith.constant 0 : i32
    %c0_i32_1 = arith.constant 0 : i32
    %c0_i32_2 = arith.constant 0 : i32
    return %arg0, %c0_i32, %c0_i32_0, %c0_i32_1 : i32, i32, i32, i32
  }
  func.func @transform_1(%arg0: i32) -> (i32, i32, i32, i32) {
    %c0_i32 = arith.constant 0 : i32
    %c0_i32_0 = arith.constant 0 : i32
    %c0_i32_1 = arith.constant 0 : i32
    %c0_i32_2 = arith.constant 0 : i32
    return %arg0, %c0_i32, %c0_i32_0, %c0_i32_1 : i32, i32, i32, i32
  }
  func.func @transform_2(%arg0: i32) -> (i32, i32, i32) {
    %c0_i32 = arith.constant 0 : i32
    %c0_i32_0 = arith.constant 0 : i32
    %c0_i32_1 = arith.constant 0 : i32
    %c0_i32_2 = arith.constant 0 : i32
    return %c0_i32, %c0_i32_0, %c0_i32_1 : i32, i32, i32
  }
  func.func @transform_3(%arg0: i32) -> (i32, i32, i32) {
    %c0_i32 = arith.constant 0 : i32
    %c0_i32_0 = arith.constant 0 : i32
    %c0_i32_1 = arith.constant 0 : i32
    %c0_i32_2 = arith.constant 0 : i32
    return %c0_i32, %c0_i32_0, %c0_i32_1 : i32, i32, i32
  }
  func.func @transform_4(%arg0: i32) -> (i32, i32) {
    %c0_i32 = arith.constant 0 : i32
    %c0_i32_0 = arith.constant 0 : i32
    %c0_i32_1 = arith.constant 0 : i32
    return %c0_i32, %c0_i32_0 : i32, i32
  }
  func.func @transform_5(%arg0: i32) -> (i32, i32) {
    %c0_i32 = arith.constant 0 : i32
    %c0_i32_0 = arith.constant 0 : i32
    %c0_i32_1 = arith.constant 0 : i32
    return %c0_i32, %c0_i32_0 : i32, i32
  }
  func.func @transform_6(%arg0: i32) -> (i32, i32, i32) {
    %c0_i32 = arith.constant 0 : i32
    %c0_i32_0 = arith.constant 0 : i32
    %c0_i32_1 = arith.constant 0 : i32
    return %arg0, %c0_i32, %c0_i32_0 : i32, i32, i32
  }
}

</mosaic_0001>

<llo_original>
// kernel: res_down_block.1
$region0: #{res_down_block.1}
  #allocation0 [shape = 'u32[]', space=smem, size = 0x4, offset = 0x4, fixed_abs, tag = 'smem constant byte address 0x4 - core index']
  #allocation1 [shape = 'u32[72,128]{1,0:T(1,128)}', space=vmem, size = 0x9000, scoped, tag = 'internal scratch']
  %s0 = inlined_call_operand.vmem [shape: bf16[2,16,9,8], index: 0, kind: input, shape index: {}]
  %s1 = inlined_call_operand.vmem [shape: bf16[2,3,9,8], index: 1, kind: input, shape index: {}]
  %s2 = inlined_call_operand.vmem [shape: bf16[6,8,24], index: 2, kind: input, shape index: {}]
  %s3 = inlined_call_operand.vmem [shape: bf16[2,24,8], index: 3, kind: input, shape index: {}]
  %s4 = inlined_call_operand.vmem [shape: f32[1,24], index: 4, kind: input, shape index: {}]
  %s5 = inlined_call_operand.vmem [shape: f32[1,8], index: 5, kind: input, shape index: {}]
  %s6 = inlined_call_operand.vmem [shape: f32[2,8,64], index: 6, kind: output, shape index: {}]
  %s7 = sld [smem:[#allocation0]]
  $region57: #{res_down_block.1} parent=0
    _
  %s9 = ssub.s32 1, %s7
  %s10 = scalar_select 0, %s9, %s7
  loop: start=0, step=1, limit=4
  $region2: #{res_down_block.1} parent=0 // loop_pre_header
    _
  $region3: #{res_down_block.1} parent=0 // loop_header
    %s12 = sphi 0, %s16
    %p13 = scmp.ge.s32.totalorder %s12, 4
    %s22 = sphi 0, %s24
    %s25 = sphi 0, %s22
    %s26 = sphi 0, %s25
    %s42 = sphi 0, %s26
    %s48 = sphi 0, %s50
    %s51 = sphi 0, %s48
    %s52 = sphi 0, %s51
    %s68 = sphi 0, %s52
    %s72 = sphi 0, %s72
    %s74 = sphi 0, %s72
    %s75 = sphi 0, %s74
    %s89 = sphi 0, %s75
    %s93 = sphi 0, %s93
    %s95 = sphi 0, %s93
    %s96 = sphi 0, %s95
    %s110 = sphi 0, %s96
    %s114 = sphi 0, %s114
    %s116 = sphi 0, %s114
    %s117 = sphi 0, %s116
    %s131 = sphi 0, %s117
    %s135 = sphi 0, %s135
    %s137 = sphi 0, %s135
    %s138 = sphi 0, %s137
    %s152 = sphi 0, %s138
    %s158 = sphi 0, %s160
    %s161 = sphi 0, %s158
    %s162 = sphi 0, %s161
    %s178 = sphi 0, %s162
  $region4: #{res_down_block.1} parent=0 // loop_header_branch
    %15 = sbr.rel (%p13) target = $region8
  $region5: #{res_down_block.1} parent=0 // loop_body
    %s17 = ssub.s32 %s12, 1
    %s18 = ssub.s32 %s12, 2
    %s19 = sadd.s32 %s12, 1
    %s20 = ssub.s32 %s12, %s19
    %p21 = scmp.eq.s32.totalorder %s20, 0
    %s23 = sadd.s32 %s22, 1
    %s24 = scalar_select %p21, %s22, %s23
    %p27 = pneg %p21
    %p28 = scmp.eq.s32.totalorder %s12, 1
    %p29 = por %p27, %p28
    %p30 = scmp.ne.s32.totalorder %s22, %s25
    %p31 = scmp.eq.s32.totalorder %s12, 0
    %p32 = por %p30, %p31
    %p33 = scmp.ne.s32.totalorder %s22, %s25
    %p34 = scmp.eq.s32.totalorder %s17, 1
    %p35 = por %p33, %p34
    %p36 = scmp.ne.s32.totalorder %s25, %s26
    %p37 = scmp.eq.s32.totalorder %s17, 0
    %p38 = por %p36, %p37
    %p39 = scmp.ne.s32.totalorder %s25, %s26
    %p40 = scmp.eq.s32.totalorder %s18, 1
    %p41 = por %p39, %p40
    %p43 = scmp.ne.s32.totalorder %s26, %s42
    %p44 = scmp.eq.s32.totalorder %s18, 0
    %p45 = por %p43, %p44
    %s46 = ssub.s32 %s12, %s19
    %p47 = scmp.eq.s32.totalorder %s46, 0
    %s49 = sadd.s32 %s48, 1
    %s50 = scalar_select %p47, %s48, %s49
    %p53 = pneg %p47
    %p54 = scmp.eq.s32.totalorder %s12, 1
    %p55 = por %p53, %p54
    %p56 = scmp.ne.s32.totalorder %s48, %s51
    %p57 = scmp.eq.s32.totalorder %s12, 0
    %p58 = por %p56, %p57
    %p59 = scmp.ne.s32.totalorder %s48, %s51
    %p60 = scmp.eq.s32.totalorder %s17, 1
    %p61 = por %p59, %p60
    %p62 = scmp.ne.s32.totalorder %s51, %s52
    %p63 = scmp.eq.s32.totalorder %s17, 0
    %p64 = por %p62, %p63
    %p65 = scmp.ne.s32.totalorder %s51, %s52
    %p66 = scmp.eq.s32.totalorder %s18, 1
    %p67 = por %p65, %p66
    %p69 = scmp.ne.s32.totalorder %s52, %s68
    %p70 = scmp.eq.s32.totalorder %s18, 0
    %p71 = por %p69, %p70
    %s73 = sadd.s32 %s72, 1
    %p76 = scmp.eq.s32.totalorder %s12, 1
    %p77 = scmp.ne.s32.totalorder %s72, %s74
    %p78 = scmp.eq.s32.totalorder %s12, 0
    %p79 = por %p77, %p78
    %p80 = scmp.ne.s32.totalorder %s72, %s74
    %p81 = scmp.eq.s32.totalorder %s17, 1
    %p82 = por %p80, %p81
    %p83 = scmp.ne.s32.totalorder %s74, %s75
    %p84 = scmp.eq.s32.totalorder %s17, 0
    %p85 = por %p83, %p84
    %p86 = scmp.ne.s32.totalorder %s74, %s75
    %p87 = scmp.eq.s32.totalorder %s18, 1
    %p88 = por %p86, %p87
    %p90 = scmp.ne.s32.totalorder %s75, %s89
    %p91 = scmp.eq.s32.totalorder %s18, 0
    %p92 = por %p90, %p91
    %s94 = sadd.s32 %s93, 1
    %p97 = scmp.eq.s32.totalorder %s12, 1
    %p98 = scmp.ne.s32.totalorder %s93, %s95
    %p99 = scmp.eq.s32.totalorder %s12, 0
    %p100 = por %p98, %p99
    %p101 = scmp.ne.s32.totalorder %s93, %s95
    %p102 = scmp.eq.s32.totalorder %s17, 1
    %p103 = por %p101, %p102
    %p104 = scmp.ne.s32.totalorder %s95, %s96
    %p105 = scmp.eq.s32.totalorder %s17, 0
    %p106 = por %p104, %p105
    %p107 = scmp.ne.s32.totalorder %s95, %s96
    %p108 = scmp.eq.s32.totalorder %s18, 1
    %p109 = por %p107, %p108
    %p111 = scmp.ne.s32.totalorder %s96, %s110
    %p112 = scmp.eq.s32.totalorder %s18, 0
    %p113 = por %p111, %p112
    %s115 = sadd.s32 %s114, 1
    %p118 = scmp.eq.s32.totalorder %s12, 1
    %p119 = scmp.ne.s32.totalorder %s114, %s116
    %p120 = scmp.eq.s32.totalorder %s12, 0
    %p121 = por %p119, %p120
    %p122 = scmp.ne.s32.totalorder %s114, %s116
    %p123 = scmp.eq.s32.totalorder %s17, 1
    %p124 = por %p122, %p123
    %p125 = scmp.ne.s32.totalorder %s116, %s117
    %p126 = scmp.eq.s32.totalorder %s17, 0
    %p127 = por %p125, %p126
    %p128 = scmp.ne.s32.totalorder %s116, %s117
    %p129 = scmp.eq.s32.totalorder %s18, 1
    %p130 = por %p128, %p129
    %p132 = scmp.ne.s32.totalorder %s117, %s131
    %p133 = scmp.eq.s32.totalorder %s18, 0
    %p134 = por %p132, %p133
    %s136 = sadd.s32 %s135, 1
    %p139 = scmp.eq.s32.totalorder %s12, 1
    %p140 = scmp.ne.s32.totalorder %s135, %s137
    %p141 = scmp.eq.s32.totalorder %s12, 0
    %p142 = por %p140, %p141
    %p143 = scmp.ne.s32.totalorder %s135, %s137
    %p144 = scmp.eq.s32.totalorder %s17, 1
    %p145 = por %p143, %p144
    %p146 = scmp.ne.s32.totalorder %s137, %s138
    %p147 = scmp.eq.s32.totalorder %s17, 0
    %p148 = por %p146, %p147
    %p149 = scmp.ne.s32.totalorder %s137, %s138
    %p150 = scmp.eq.s32.totalorder %s18, 1
    %p151 = por %p149, %p150
    %p153 = scmp.ne.s32.totalorder %s138, %s152
    %p154 = scmp.eq.s32.totalorder %s18, 0
    %p155 = por %p153, %p154
    %s156 = ssub.s32 %s12, %s19
    %p157 = scmp.eq.s32.totalorder %s156, 0
    %s159 = sadd.s32 %s158, 1
    %s160 = scalar_select %p157, %s158, %s159
    %p163 = pneg %p157
    %p164 = scmp.eq.s32.totalorder %s12, 1
    %p165 = por %p163, %p164
    %p166 = scmp.ne.s32.totalorder %s158, %s161
    %p167 = scmp.eq.s32.totalorder %s12, 0
    %p168 = por %p166, %p167
    %p169 = scmp.ne.s32.totalorder %s158, %s161
    %p170 = scmp.eq.s32.totalorder %s17, 1
    %p171 = por %p169, %p170
    %p172 = scmp.ne.s32.totalorder %s161, %s162
    %p173 = scmp.eq.s32.totalorder %s17, 0
    %p174 = por %p172, %p173
    %p175 = scmp.ne.s32.totalorder %s161, %s162
    %p176 = scmp.eq.s32.totalorder %s18, 1
    %p177 = por %p175, %p176
    %p179 = scmp.ne.s32.totalorder %s162, %s178
    %p180 = scmp.eq.s32.totalorder %s18, 0
    %p181 = por %p179, %p180
    %p182 = scmp.le.s32.totalorder 1, %s12
    %p183 = scmp.lt.s32.totalorder %s12, 3
    %p184 = pnand %p182, %p183
    %p185 = pneg %p184
    // Predicated region
    $region9: #{res_down_block.1} parent=5 // pred_check
      _
    $region10: #{res_down_block.1} parent=5 // pred_check_branch
      %187 = sbr.rel (%p184) target = $region12
    $region11: #{res_down_block.1} parent=5 // pred_region
      %s188 = ssub.s32 %s12, 1
      // Predicated region
      $region13: #{res_down_block.1} parent=11 // pred_check
        %p189 = pneg %p85
      $region14: #{res_down_block.1} parent=11 // pred_check_branch
        %191 = sbr.rel (%p189) target = $region16
      $region15: #{res_down_block.1} parent=11 // pred_region
        _
      $region16: #{res_down_block.1} parent=11 // pred_fallthru
        _
      // Predicated region
      $region17: #{res_down_block.1} parent=11 // pred_check
        %p192 = pneg %p106
      $region18: #{res_down_block.1} parent=11 // pred_check_branch
        %194 = sbr.rel (%p192) target = $region20
      $region19: #{res_down_block.1} parent=11 // pred_region
        _
      $region20: #{res_down_block.1} parent=11 // pred_fallthru
        _
      // Predicated region
      $region21: #{res_down_block.1} parent=11 // pred_check
        %p195 = pneg %p127
      $region22: #{res_down_block.1} parent=11 // pred_check_branch
        %197 = sbr.rel (%p195) target = $region24
      $region23: #{res_down_block.1} parent=11 // pred_region
        _
      $region24: #{res_down_block.1} parent=11 // pred_fallthru
        _
      // Predicated region
      $region25: #{res_down_block.1} parent=11 // pred_check
        %p198 = pneg %p148
      $region26: #{res_down_block.1} parent=11 // pred_check_branch
        %200 = sbr.rel (%p198) target = $region28
      $region27: #{res_down_block.1} parent=11 // pred_region
        _
      $region28: #{res_down_block.1} parent=11 // pred_fallthru
        _
    $region12: #{res_down_block.1} parent=5 // pred_fallthru
      _
    %p201 = scmp.lt.s32.totalorder %s12, 2
    // Predicated region
    $region29: #{res_down_block.1} parent=5 // pred_check
      %p202 = pneg %p201
    $region30: #{res_down_block.1} parent=5 // pred_check_branch
      %204 = sbr.rel (%p202) target = $region32
    $region31: #{res_down_block.1} parent=5 // pred_region
      // Predicated region
      $region33: #{res_down_block.1} parent=31 // pred_check
        %p205 = pneg %p32
      $region34: #{res_down_block.1} parent=31 // pred_check_branch
        %207 = sbr.rel (%p205) target = $region36
      $region35: #{res_down_block.1} parent=31 // pred_region
        %p208 = scmp.lt.s32.totalorder %s12, 1
        %s209 = scalar_select %p208, %s12, 1
        %s210 = smul.addr %s209, 32
        %s211 = smul.addr %s210, 4
        %s212 = scalar_lea.vmem %s0, %s211
      $region36: #{res_down_block.1} parent=31 // pred_fallthru
        _
      // Predicated region
      $region37: #{res_down_block.1} parent=31 // pred_check
        %p213 = pneg %p58
      $region38: #{res_down_block.1} parent=31 // pred_check_branch
        %215 = sbr.rel (%p213) target = $region40
      $region39: #{res_down_block.1} parent=31 // pred_region
        %p216 = scmp.lt.s32.totalorder %s12, 1
        %s217 = scalar_select %p216, %s12, 1
        %s218 = smul.addr %s217, 6
        %s219 = smul.addr %s218, 4
        %s220 = scalar_lea.vmem %s1, %s219
      $region40: #{res_down_block.1} parent=31 // pred_fallthru
        _
    $region32: #{res_down_block.1} parent=5 // pred_fallthru
      _
    %p221 = scmp.le.s32.totalorder 1, %s12
    %p222 = scmp.lt.s32.totalorder %s12, 3
    %p223 = pnand %p221, %p222
    %p224 = pneg %p223
    // Predicated region
    $region41: #{res_down_block.1} parent=5 // pred_check
      _
    $region42: #{res_down_block.1} parent=5 // pred_check_branch
      %226 = sbr.rel (%p223) target = $region44
    $region43: #{res_down_block.1} parent=5 // pred_region
      %s227 = ssub.s32 %s12, 1
      %p228 = scmp.lt.s32.totalorder %s17, 1
      %s229 = scalar_select %p228, %s17, 1
      %s230 = smul.addr %s229, 32
      %s231 = smul.addr %s230, 4
      %s232 = scalar_lea.vmem %s0, %s231
      %p233 = pneg %p38
      %p234 = pneg %p35
      %p235 = scmp.lt.s32.totalorder %s17, 1
      %s236 = scalar_select %p235, %s17, 1
      %s237 = smul.addr %s236, 6
      %s238 = smul.addr %s237, 4
      %s239 = scalar_lea.vmem %s1, %s238
      %p240 = pneg %p64
      %p241 = pneg %p61
      %p242 = pneg %p85
      %p243 = pneg %p82
      %p244 = pneg %p106
      %p245 = pneg %p103
      %p246 = pneg %p127
      %p247 = pneg %p124
      %p248 = pneg %p148
      %p249 = pneg %p145
      %p250 = pneg %p174
      %p251 = pneg %p171
      %p252 = scmp.lt.s32.totalorder %s17, 1
      %s253 = scalar_select %p252, %s17, 1
      %s254 = smul.addr %s253, 8
      %s255 = scalar_lea.vmem %s6, %s254
      %p256 = scmp.lt.s32.totalorder %s17, 1
      %s257 = scalar_select %p256, %s17, 1
      %s258 = smul.addr %s257, 32
      %s259 = smul.addr %s258, 4
      %s260 = scalar_lea.vmem %s0, %s259
      %p261 = scmp.lt.s32.totalorder %s17, 1
      %s262 = scalar_select %p261, %s17, 1
      %s263 = smul.addr %s262, 6
      %s264 = smul.addr %s263, 4
      %s265 = scalar_lea.vmem %s1, %s264
      %p266 = scmp.lt.s32.totalorder %s17, 1
      %s267 = scalar_select %p266, %s17, 1
      %s268 = smul.addr %s267, 8
      %s269 = scalar_lea.vmem %s6, %s268
      %v271 = vld [vmem:[%s260] sm:$0xf]
      %v272 = vld [vmem:[%s260 + $0x4] sm:$0x1]
      %v273 = vld [vmem:[%s260 + $0x8] sm:$0xf]
      %v274 = vld [vmem:[%s260 + $0xc] sm:$0x1]
      %v275 = vld [vmem:[%s260 + $0x10] sm:$0xf]
      %v276 = vld [vmem:[%s260 + $0x14] sm:$0x1]
      %v277 = vld [vmem:[%s260 + $0x18] sm:$0xf]
      %v278 = vld [vmem:[%s260 + $0x1c] sm:$0x1]
      %v279 = vld [vmem:[%s260 + $0x20] sm:$0xf]
      %v280 = vld [vmem:[%s260 + $0x24] sm:$0x1]
      %v281 = vld [vmem:[%s260 + $0x28] sm:$0xf]
      %v282 = vld [vmem:[%s260 + $0x2c] sm:$0x1]
      %v283 = vld [vmem:[%s260 + $0x30] sm:$0xf]
      %v284 = vld [vmem:[%s260 + $0x34] sm:$0x1]
      %v285 = vld [vmem:[%s260 + $0x38] sm:$0xf]
      %v286 = vld [vmem:[%s260 + $0x3c] sm:$0x1]
      %v287 = vld [vmem:[%s260 + $0x40] sm:$0xf]
      %v288 = vld [vmem:[%s260 + $0x44] sm:$0x1]
      %v289 = vld [vmem:[%s260 + $0x48] sm:$0xf]
      %v290 = vld [vmem:[%s260 + $0x4c] sm:$0x1]
      %v291 = vld [vmem:[%s260 + $0x50] sm:$0xf]
      %v292 = vld [vmem:[%s260 + $0x54] sm:$0x1]
      %v293 = vld [vmem:[%s260 + $0x58] sm:$0xf]
      %v294 = vld [vmem:[%s260 + $0x5c] sm:$0x1]
      %v295 = vld [vmem:[%s260 + $0x60] sm:$0xf]
      %v296 = vld [vmem:[%s260 + $0x64] sm:$0x1]
      %v297 = vld [vmem:[%s260 + $0x68] sm:$0xf]
      %v298 = vld [vmem:[%s260 + $0x6c] sm:$0x1]
      %v299 = vld [vmem:[%s260 + $0x70] sm:$0xf]
      %v300 = vld [vmem:[%s260 + $0x74] sm:$0x1]
      %v301 = vld [vmem:[%s260 + $0x78] sm:$0xf]
      %v302 = vld [vmem:[%s260 + $0x7c] sm:$0x1]
      %v335 = vrot.slane %v271, 3
      %v336 = vrot.slane %v272, 3
      %v337 = vrot.slane %v273, 3
      %v338 = vrot.slane %v274, 3
      %v339 = vrot.slane %v275, 3
      %v340 = vrot.slane %v276, 3
      %v341 = vrot.slane %v277, 3
      %v342 = vrot.slane %v278, 3
      %v343 = vrot.slane %v279, 3
      %v344 = vrot.slane %v280, 3
      %v345 = vrot.slane %v281, 3
      %v346 = vrot.slane %v282, 3
      %v347 = vrot.slane %v283, 3
      %v348 = vrot.slane %v284, 3
      %v349 = vrot.slane %v285, 3
      %v350 = vrot.slane %v286, 3
      %v351 = vrot.slane %v287, 3
      %v352 = vrot.slane %v288, 3
      %v353 = vrot.slane %v289, 3
      %v354 = vrot.slane %v290, 3
      %v355 = vrot.slane %v291, 3
      %v356 = vrot.slane %v292, 3
      %v357 = vrot.slane %v293, 3
      %v358 = vrot.slane %v294, 3
      %v359 = vrot.slane %v295, 3
      %v360 = vrot.slane %v296, 3
      %v361 = vrot.slane %v297, 3
      %v362 = vrot.slane %v298, 3
      %v363 = vrot.slane %v299, 3
      %v364 = vrot.slane %v300, 3
      %v365 = vrot.slane %v301, 3
      %v366 = vrot.slane %v302, 3
      %vm367 = vcmask 1040384
      %v370 = vsel %vm367, %v271, %v335
      %vm372 = vcmask 1041409
      %v373 = vsel %vm372, %v271, %v335
      %v375 = vrot.slane %v373, 1
      %vm376 = vcmask 1042434
      %v377 = vsel %vm376, %v271, %v335
      %v379 = vrot.slane %v377, 2
      %vm380 = vcmask 1043459
      %v381 = vsel %vm380, %v271, %v335
      %v383 = vrot.slane %v381, 3
      %v386 = vsel %vm367, %v272, %v336
      %v390 = vsel %vm367, %v273, %v337
      %v392 = vsel %vm372, %v273, %v337
      %v394 = vrot.slane %v392, 1
      %v395 = vsel %vm376, %v273, %v337
      %v397 = vrot.slane %v395, 2
      %v398 = vsel %vm380, %v273, %v337
      %v400 = vrot.slane %v398, 3
      %v403 = vsel %vm367, %v274, %v338
      %v407 = vsel %vm367, %v275, %v339
      %v409 = vsel %vm372, %v275, %v339
      %v411 = vrot.slane %v409, 1
      %v412 = vsel %vm376, %v275, %v339
      %v414 = vrot.slane %v412, 2
      %v415 = vsel %vm380, %v275, %v339
      %v417 = vrot.slane %v415, 3
      %v420 = vsel %vm367, %v276, %v340
      %v424 = vsel %vm367, %v277, %v341
      %v426 = vsel %vm372, %v277, %v341
      %v428 = vrot.slane %v426, 1
      %v429 = vsel %vm376, %v277, %v341
      %v431 = vrot.slane %v429, 2
      %v432 = vsel %vm380, %v277, %v341
      %v434 = vrot.slane %v432, 3
      %v437 = vsel %vm367, %v278, %v342
      %v441 = vsel %vm367, %v279, %v343
      %v443 = vsel %vm372, %v279, %v343
      %v445 = vrot.slane %v443, 1
      %v446 = vsel %vm376, %v279, %v343
      %v448 = vrot.slane %v446, 2
      %v449 = vsel %vm380, %v279, %v343
      %v451 = vrot.slane %v449, 3
      %v454 = vsel %vm367, %v280, %v344
      %v458 = vsel %vm367, %v281, %v345
      %v460 = vsel %vm372, %v281, %v345
      %v462 = vrot.slane %v460, 1
      %v463 = vsel %vm376, %v281, %v345
      %v465 = vrot.slane %v463, 2
      %v466 = vsel %vm380, %v281, %v345
      %v468 = vrot.slane %v466, 3
      %v471 = vsel %vm367, %v282, %v346
      %v475 = vsel %vm367, %v283, %v347
      %v477 = vsel %vm372, %v283, %v347
      %v479 = vrot.slane %v477, 1
      %v480 = vsel %vm376, %v283, %v347
      %v482 = vrot.slane %v480, 2
      %v483 = vsel %vm380, %v283, %v347
      %v485 = vrot.slane %v483, 3
      %v488 = vsel %vm367, %v284, %v348
      %v492 = vsel %vm367, %v285, %v349
      %v494 = vsel %vm372, %v285, %v349
      %v496 = vrot.slane %v494, 1
      %v497 = vsel %vm376, %v285, %v349
      %v499 = vrot.slane %v497, 2
      %v500 = vsel %vm380, %v285, %v349
      %v502 = vrot.slane %v500, 3
      %v505 = vsel %vm367, %v286, %v350
      %v509 = vsel %vm367, %v287, %v351
      %v511 = vsel %vm372, %v287, %v351
      %v513 = vrot.slane %v511, 1
      %v514 = vsel %vm376, %v287, %v351
      %v516 = vrot.slane %v514, 2
      %v517 = vsel %vm380, %v287, %v351
      %v519 = vrot.slane %v517, 3
      %v522 = vsel %vm367, %v288, %v352
      %v526 = vsel %vm367, %v289, %v353
      %v528 = vsel %vm372, %v289, %v353
      %v530 = vrot.slane %v528, 1
      %v531 = vsel %vm376, %v289, %v353
      %v533 = vrot.slane %v531, 2
      %v534 = vsel %vm380, %v289, %v353
      %v536 = vrot.slane %v534, 3
      %v539 = vsel %vm367, %v290, %v354
      %v543 = vsel %vm367, %v291, %v355
      %v545 = vsel %vm372, %v291, %v355
      %v547 = vrot.slane %v545, 1
      %v548 = vsel %vm376, %v291, %v355
      %v550 = vrot.slane %v548, 2
      %v551 = vsel %vm380, %v291, %v355
      %v553 = vrot.slane %v551, 3
      %v556 = vsel %vm367, %v292, %v356
      %v560 = vsel %vm367, %v293, %v357
      %v562 = vsel %vm372, %v293, %v357
      %v564 = vrot.slane %v562, 1
      %v565 = vsel %vm376, %v293, %v357
      %v567 = vrot.slane %v565, 2
      %v568 = vsel %vm380, %v293, %v357
      %v570 = vrot.slane %v568, 3
      %v573 = vsel %vm367, %v294, %v358
      %v577 = vsel %vm367, %v295, %v359
      %v579 = vsel %vm372, %v295, %v359
      %v581 = vrot.slane %v579, 1
      %v582 = vsel %vm376, %v295, %v359
      %v584 = vrot.slane %v582, 2
      %v585 = vsel %vm380, %v295, %v359
      %v587 = vrot.slane %v585, 3
      %v590 = vsel %vm367, %v296, %v360
      %v594 = vsel %vm367, %v297, %v361
      %v596 = vsel %vm372, %v297, %v361
      %v598 = vrot.slane %v596, 1
      %v599 = vsel %vm376, %v297, %v361
      %v601 = vrot.slane %v599, 2
      %v602 = vsel %vm380, %v297, %v361
      %v604 = vrot.slane %v602, 3
      %v607 = vsel %vm367, %v298, %v362
      %v611 = vsel %vm367, %v299, %v363
      %v613 = vsel %vm372, %v299, %v363
      %v615 = vrot.slane %v613, 1
      %v616 = vsel %vm376, %v299, %v363
      %v618 = vrot.slane %v616, 2
      %v619 = vsel %vm380, %v299, %v363
      %v621 = vrot.slane %v619, 3
      %v624 = vsel %vm367, %v300, %v364
      %v628 = vsel %vm367, %v301, %v365
      %v630 = vsel %vm372, %v301, %v365
      %v632 = vrot.slane %v630, 1
      %v633 = vsel %vm376, %v301, %v365
      %v635 = vrot.slane %v633, 2
      %v636 = vsel %vm380, %v301, %v365
      %v638 = vrot.slane %v636, 3
      %v641 = vsel %vm367, %v302, %v366
      %v643 = vunpack.i.l.s16 %v370
      %v644 = vunpack.i.h.s16 %v370
      %v645 = vunpack.i.l.s16 %v375
      %v646 = vunpack.i.h.s16 %v375
      %v647 = vunpack.i.l.s16 %v379
      %v648 = vunpack.i.h.s16 %v379
      %v649 = vunpack.i.l.s16 %v383
      %v650 = vunpack.i.h.s16 %v383
      %v651 = vunpack.i.l.s16 %v386
      %v652 = vunpack.i.l.s16 %v390
      %v653 = vunpack.i.h.s16 %v390
      %v654 = vunpack.i.l.s16 %v394
      %v655 = vunpack.i.h.s16 %v394
      %v656 = vunpack.i.l.s16 %v397
      %v657 = vunpack.i.h.s16 %v397
      %v658 = vunpack.i.l.s16 %v400
      %v659 = vunpack.i.h.s16 %v400
      %v660 = vunpack.i.l.s16 %v403
      %v661 = vunpack.i.l.s16 %v407
      %v662 = vunpack.i.h.s16 %v407
      %v663 = vunpack.i.l.s16 %v411
      %v664 = vunpack.i.h.s16 %v411
      %v665 = vunpack.i.l.s16 %v414
      %v666 = vunpack.i.h.s16 %v414
      %v667 = vunpack.i.l.s16 %v417
      %v668 = vunpack.i.h.s16 %v417
      %v669 = vunpack.i.l.s16 %v420
      %v670 = vunpack.i.l.s16 %v424
      %v671 = vunpack.i.h.s16 %v424
      %v672 = vunpack.i.l.s16 %v428
      %v673 = vunpack.i.h.s16 %v428
      %v674 = vunpack.i.l.s16 %v431
      %v675 = vunpack.i.h.s16 %v431
      %v676 = vunpack.i.l.s16 %v434
      %v677 = vunpack.i.h.s16 %v434
      %v678 = vunpack.i.l.s16 %v437
      %v679 = vunpack.i.l.s16 %v441
      %v680 = vunpack.i.h.s16 %v441
      %v681 = vunpack.i.l.s16 %v445
      %v682 = vunpack.i.h.s16 %v445
      %v683 = vunpack.i.l.s16 %v448
      %v684 = vunpack.i.h.s16 %v448
      %v685 = vunpack.i.l.s16 %v451
      %v686 = vunpack.i.h.s16 %v451
      %v687 = vunpack.i.l.s16 %v454
      %v688 = vunpack.i.l.s16 %v458
      %v689 = vunpack.i.h.s16 %v458
      %v690 = vunpack.i.l.s16 %v462
      %v691 = vunpack.i.h.s16 %v462
      %v692 = vunpack.i.l.s16 %v465
      %v693 = vunpack.i.h.s16 %v465
      %v694 = vunpack.i.l.s16 %v468
      %v695 = vunpack.i.h.s16 %v468
      %v696 = vunpack.i.l.s16 %v471
      %v697 = vunpack.i.l.s16 %v475
      %v698 = vunpack.i.h.s16 %v475
      %v699 = vunpack.i.l.s16 %v479
      %v700 = vunpack.i.h.s16 %v479
      %v701 = vunpack.i.l.s16 %v482
      %v702 = vunpack.i.h.s16 %v482
      %v703 = vunpack.i.l.s16 %v485
      %v704 = vunpack.i.h.s16 %v485
      %v705 = vunpack.i.l.s16 %v488
      %v706 = vunpack.i.l.s16 %v492
      %v707 = vunpack.i.h.s16 %v492
      %v708 = vunpack.i.l.s16 %v496
      %v709 = vunpack.i.h.s16 %v496
      %v710 = vunpack.i.l.s16 %v499
      %v711 = vunpack.i.h.s16 %v499
      %v712 = vunpack.i.l.s16 %v502
      %v713 = vunpack.i.h.s16 %v502
      %v714 = vunpack.i.l.s16 %v505
      %v715 = vunpack.i.l.s16 %v509
      %v716 = vunpack.i.h.s16 %v509
      %v717 = vunpack.i.l.s16 %v513
      %v718 = vunpack.i.h.s16 %v513
      %v719 = vunpack.i.l.s16 %v516
      %v720 = vunpack.i.h.s16 %v516
      %v721 = vunpack.i.l.s16 %v519
      %v722 = vunpack.i.h.s16 %v519
      %v723 = vunpack.i.l.s16 %v522
      %v724 = vunpack.i.l.s16 %v526
      %v725 = vunpack.i.h.s16 %v526
      %v726 = vunpack.i.l.s16 %v530
      %v727 = vunpack.i.h.s16 %v530
      %v728 = vunpack.i.l.s16 %v533
      %v729 = vunpack.i.h.s16 %v533
      %v730 = vunpack.i.l.s16 %v536
      %v731 = vunpack.i.h.s16 %v536
      %v732 = vunpack.i.l.s16 %v539
      %v733 = vunpack.i.l.s16 %v543
      %v734 = vunpack.i.h.s16 %v543
      %v735 = vunpack.i.l.s16 %v547
      %v736 = vunpack.i.h.s16 %v547
      %v737 = vunpack.i.l.s16 %v550
      %v738 = vunpack.i.h.s16 %v550
      %v739 = vunpack.i.l.s16 %v553
      %v740 = vunpack.i.h.s16 %v553
      %v741 = vunpack.i.l.s16 %v556
      %v742 = vunpack.i.l.s16 %v560
      %v743 = vunpack.i.h.s16 %v560
      %v744 = vunpack.i.l.s16 %v564
      %v745 = vunpack.i.h.s16 %v564
      %v746 = vunpack.i.l.s16 %v567
      %v747 = vunpack.i.h.s16 %v567
      %v748 = vunpack.i.l.s16 %v570
      %v749 = vunpack.i.h.s16 %v570
      %v750 = vunpack.i.l.s16 %v573
      %v751 = vunpack.i.l.s16 %v577
      %v752 = vunpack.i.h.s16 %v577
      %v753 = vunpack.i.l.s16 %v581
      %v754 = vunpack.i.h.s16 %v581
      %v755 = vunpack.i.l.s16 %v584
      %v756 = vunpack.i.h.s16 %v584
      %v757 = vunpack.i.l.s16 %v587
      %v758 = vunpack.i.h.s16 %v587
      %v759 = vunpack.i.l.s16 %v590
      %v760 = vunpack.i.l.s16 %v594
      %v761 = vunpack.i.h.s16 %v594
      %v762 = vunpack.i.l.s16 %v598
      %v763 = vunpack.i.h.s16 %v598
      %v764 = vunpack.i.l.s16 %v601
      %v765 = vunpack.i.h.s16 %v601
      %v766 = vunpack.i.l.s16 %v604
      %v767 = vunpack.i.h.s16 %v604
      %v768 = vunpack.i.l.s16 %v607
      %v769 = vunpack.i.l.s16 %v611
      %v770 = vunpack.i.h.s16 %v611
      %v771 = vunpack.i.l.s16 %v615
      %v772 = vunpack.i.h.s16 %v615
      %v773 = vunpack.i.l.s16 %v618
      %v774 = vunpack.i.h.s16 %v618
      %v775 = vunpack.i.l.s16 %v621
      %v776 = vunpack.i.h.s16 %v621
      %v777 = vunpack.i.l.s16 %v624
      %v778 = vunpack.i.l.s16 %v628
      %v779 = vunpack.i.h.s16 %v628
      %v780 = vunpack.i.l.s16 %v632
      %v781 = vunpack.i.h.s16 %v632
      %v782 = vunpack.i.l.s16 %v635
      %v783 = vunpack.i.h.s16 %v635
      %v784 = vunpack.i.l.s16 %v638
      %v785 = vunpack.i.h.s16 %v638
      %v786 = vunpack.i.l.s16 %v641
      %v787 = vld [vmem:[%s265] sm:$0xf]
      %v788 = vld [vmem:[%s265 + $0x4] sm:$0x1]
      %v789 = vld [vmem:[%s265 + $0x8] sm:$0xf]
      %v790 = vld [vmem:[%s265 + $0xc] sm:$0x1]
      %v791 = vld [vmem:[%s265 + $0x10] sm:$0xf]
      %v792 = vld [vmem:[%s265 + $0x14] sm:$0x1]
      %v799 = vrot.slane %v787, 3
      %v800 = vrot.slane %v788, 3
      %v801 = vrot.slane %v789, 3
      %v802 = vrot.slane %v790, 3
      %v803 = vrot.slane %v791, 3
      %v804 = vrot.slane %v792, 3
      %v807 = vsel %vm367, %v787, %v799
      %v809 = vsel %vm372, %v787, %v799
      %v811 = vrot.slane %v809, 1
      %v812 = vsel %vm376, %v787, %v799
      %v814 = vrot.slane %v812, 2
      %v815 = vsel %vm380, %v787, %v799
      %v817 = vrot.slane %v815, 3
      %v820 = vsel %vm367, %v788, %v800
      %v824 = vsel %vm367, %v789, %v801
      %v826 = vsel %vm372, %v789, %v801
      %v828 = vrot.slane %v826, 1
      %v829 = vsel %vm376, %v789, %v801
      %v831 = vrot.slane %v829, 2
      %v832 = vsel %vm380, %v789, %v801
      %v834 = vrot.slane %v832, 3
      %v837 = vsel %vm367, %v790, %v802
      %v841 = vsel %vm367, %v791, %v803
      %v843 = vsel %vm372, %v791, %v803
      %v845 = vrot.slane %v843, 1
      %v846 = vsel %vm376, %v791, %v803
      %v848 = vrot.slane %v846, 2
      %v849 = vsel %vm380, %v791, %v803
      %v851 = vrot.slane %v849, 3
      %v854 = vsel %vm367, %v792, %v804
      %v856 = vunpack.i.l.s16 %v807
      %v857 = vunpack.i.h.s16 %v807
      %v858 = vunpack.i.l.s16 %v811
      %v859 = vunpack.i.h.s16 %v811
      %v860 = vunpack.i.l.s16 %v814
      %v861 = vunpack.i.h.s16 %v814
      %v862 = vunpack.i.l.s16 %v817
      %v863 = vunpack.i.h.s16 %v817
      %v864 = vunpack.i.l.s16 %v820
      %v865 = vunpack.i.l.s16 %v824
      %v866 = vunpack.i.h.s16 %v824
      %v867 = vunpack.i.l.s16 %v828
      %v868 = vunpack.i.h.s16 %v828
      %v869 = vunpack.i.l.s16 %v831
      %v870 = vunpack.i.h.s16 %v831
      %v871 = vunpack.i.l.s16 %v834
      %v872 = vunpack.i.h.s16 %v834
      %v873 = vunpack.i.l.s16 %v837
      %v874 = vunpack.i.l.s16 %v841
      %v875 = vunpack.i.h.s16 %v841
      %v876 = vunpack.i.l.s16 %v845
      %v877 = vunpack.i.h.s16 %v845
      %v878 = vunpack.i.l.s16 %v848
      %v879 = vunpack.i.h.s16 %v848
      %v880 = vunpack.i.l.s16 %v851
      %v881 = vunpack.i.h.s16 %v851
      %v882 = vunpack.i.l.s16 %v854
      %v883 = vpack.i.b16 %v857, %v856
      %v884 = vpack.i.b16 %v859, %v858
      %v885 = vpack.i.b16 %v861, %v860
      %v886 = vpack.i.b16 %v863, %v862
      %889 = vst [vmem:[#allocation1] ss:$9 sm:$0xff] %v883
      %s891 = scalar_lea.vmem [#allocation1], 1
      %892 = vst [vmem:[%s891] ss:$9 sm:$0xff] %v884
      %s894 = scalar_lea.vmem [#allocation1], 2
      %895 = vst [vmem:[%s894] ss:$9 sm:$0xff] %v885
      %s897 = scalar_lea.vmem [#allocation1], 3
      %898 = vst [vmem:[%s897] ss:$9 sm:$0xff] %v886
      %s900 = scalar_lea.vmem [#allocation1], 4
      %901 = vst [vmem:[%s900] ss:$9 sm:$0xff] %v864
      %v902 = vld [vmem:[#allocation1] sm:$0xff]
      %v904 = vpack.i.b16 %v643, %v643
      %v905 = vpack.i.b16 %v645, %v644
      %v906 = vpack.i.b16 %v647, %v646
      %v907 = vpack.i.b16 %v649, %v648
      %v908 = vpack.i.b16 %v651, %v650
      %v909 = vpack.i.b16 %v653, %v652
      %v910 = vpack.i.b16 %v655, %v654
      %v911 = vpack.i.b16 %v657, %v656
      %v912 = vpack.i.b16 %v659, %v658
      %v913 = vpack.i.b16 %v661, %v660
      %v914 = vpack.i.b16 %v663, %v662
      %v915 = vpack.i.b16 %v665, %v664
      %v916 = vpack.i.b16 %v667, %v666
      %v917 = vpack.i.b16 %v669, %v668
      %v918 = vpack.i.b16 %v671, %v670
      %v919 = vpack.i.b16 %v673, %v672
      %v920 = vpack.i.b16 %v675, %v674
      %v921 = vpack.i.b16 %v677, %v676
      %v922 = vpack.i.b16 %v679, %v678
      %v923 = vpack.i.b16 %v681, %v680
      %v924 = vpack.i.b16 %v683, %v682
      %v925 = vpack.i.b16 %v685, %v684
      %v926 = vpack.i.b16 %v687, %v686
      %v927 = vpack.i.b16 %v689, %v688
      %v928 = vpack.i.b16 %v691, %v690
      %v929 = vpack.i.b16 %v693, %v692
      %v930 = vpack.i.b16 %v695, %v694
      %v931 = vpack.i.b16 %v697, %v696
      %v932 = vpack.i.b16 %v699, %v698
      %v933 = vpack.i.b16 %v701, %v700
      %v934 = vpack.i.b16 %v703, %v702
      %v935 = vpack.i.b16 %v705, %v704
      %v936 = vpack.i.b16 %v707, %v706
      %v937 = vpack.i.b16 %v709, %v708
      %v938 = vpack.i.b16 %v711, %v710
      %v939 = vpack.i.b16 %v713, %v712
      %v940 = vpack.i.b16 %v715, %v714
      %v941 = vpack.i.b16 %v717, %v716
      %v942 = vpack.i.b16 %v719, %v718
      %v943 = vpack.i.b16 %v721, %v720
      %v944 = vpack.i.b16 %v723, %v722
      %v945 = vpack.i.b16 %v725, %v724
      %v946 = vpack.i.b16 %v727, %v726
      %v947 = vpack.i.b16 %v729, %v728
      %v948 = vpack.i.b16 %v731, %v730
      %v949 = vpack.i.b16 %v733, %v732
      %v950 = vpack.i.b16 %v735, %v734
      %v951 = vpack.i.b16 %v737, %v736
      %v952 = vpack.i.b16 %v739, %v738
      %v953 = vpack.i.b16 %v741, %v740
      %v954 = vpack.i.b16 %v743, %v742
      %v955 = vpack.i.b16 %v745, %v744
      %v956 = vpack.i.b16 %v747, %v746
      %v957 = vpack.i.b16 %v749, %v748
      %v958 = vpack.i.b16 %v751, %v750
      %v959 = vpack.i.b16 %v753, %v752
      %v960 = vpack.i.b16 %v755, %v754
      %v961 = vpack.i.b16 %v757, %v756
      %v962 = vpack.i.b16 %v759, %v758
      %v963 = vpack.i.b16 %v761, %v760
      %v964 = vpack.i.b16 %v763, %v762
      %v965 = vpack.i.b16 %v765, %v764
      %v966 = vpack.i.b16 %v767, %v766
      %v967 = vpack.i.b16 %v769, %v768
      %v968 = vpack.i.b16 %v771, %v770
      %v969 = vpack.i.b16 %v773, %v772
      %v970 = vpack.i.b16 %v775, %v774
      %v971 = vpack.i.b16 %v777, %v776
      %v972 = vpack.i.b16 %v779, %v778
      %v973 = vpack.i.b16 %v781, %v780
      %v974 = vpack.i.b16 %v783, %v782
      %v975 = vpack.i.b16 %v785, %v784
      %s978 = scalar_lea.vmem [#allocation1], 4
      %979 = vst [vmem:[%s978] ss:$9 sm:$0xff] %v904
      %s981 = scalar_lea.vmem [#allocation1], 5
      %982 = vst [vmem:[%s981] ss:$9 sm:$0xff] %v905
      %s984 = scalar_lea.vmem [#allocation1], 6
      %985 = vst [vmem:[%s984] ss:$9 sm:$0xff] %v906
      %s987 = scalar_lea.vmem [#allocation1], 7
      %988 = vst [vmem:[%s987] ss:$9 sm:$0xff] %v907
      %v989 = vld [vmem:[#allocation1] sm:$0xff]
      %991 = vst [vmem:[#allocation1] ss:$9 sm:$0xff] %v908
      %s993 = scalar_lea.vmem [#allocation1], 1
      %994 = vst [vmem:[%s993] ss:$9 sm:$0xff] %v909
      %s996 = scalar_lea.vmem [#allocation1], 2
      %997 = vst [vmem:[%s996] ss:$9 sm:$0xff] %v910
      %s999 = scalar_lea.vmem [#allocation1], 3
      %1000 = vst [vmem:[%s999] ss:$9 sm:$0xff] %v911
      %1002 = vst [vmem:[%s978] ss:$9 sm:$0xff] %v912
      %1004 = vst [vmem:[%s981] ss:$9 sm:$0xff] %v913
      %1006 = vst [vmem:[%s984] ss:$9 sm:$0xff] %v914
      %1008 = vst [vmem:[%s987] ss:$9 sm:$0xff] %v915
      %v1009 = vld [vmem:[#allocation1] sm:$0xff]
      %1012 = vst [vmem:[#allocation1] ss:$9 sm:$0xff] %v916
      %1014 = vst [vmem:[%s993] ss:$9 sm:$0xff] %v917
      %1016 = vst [vmem:[%s996] ss:$9 sm:$0xff] %v918
      %1018 = vst [vmem:[%s999] ss:$9 sm:$0xff] %v919
      %1020 = vst [vmem:[%s978] ss:$9 sm:$0xff] %v920
      %1022 = vst [vmem:[%s981] ss:$9 sm:$0xff] %v921
      %1024 = vst [vmem:[%s984] ss:$9 sm:$0xff] %v922
      %1026 = vst [vmem:[%s987] ss:$9 sm:$0xff] %v923
      %v1027 = vld [vmem:[#allocation1] sm:$0xff]
      %1030 = vst [vmem:[#allocation1] ss:$9 sm:$0xff] %v924
      %1032 = vst [vmem:[%s993] ss:$9 sm:$0xff] %v925
      %1034 = vst [vmem:[%s996] ss:$9 sm:$0xff] %v926
      %1036 = vst [vmem:[%s999] ss:$9 sm:$0xff] %v927
      %1038 = vst [vmem:[%s978] ss:$9 sm:$0xff] %v928
      %1040 = vst [vmem:[%s981] ss:$9 sm:$0xff] %v929
      %1042 = vst [vmem:[%s984] ss:$9 sm:$0xff] %v930
      %1044 = vst [vmem:[%s987] ss:$9 sm:$0xff] %v931
      %v1045 = vld [vmem:[#allocation1] sm:$0xff]
      %1048 = vst [vmem:[#allocation1] ss:$9 sm:$0xff] %v932
      %1050 = vst [vmem:[%s993] ss:$9 sm:$0xff] %v933
      %1052 = vst [vmem:[%s996] ss:$9 sm:$0xff] %v934
      %1054 = vst [vmem:[%s999] ss:$9 sm:$0xff] %v935
      %1056 = vst [vmem:[%s978] ss:$9 sm:$0xff] %v936
      %1058 = vst [vmem:[%s981] ss:$9 sm:$0xff] %v937
      %1060 = vst [vmem:[%s984] ss:$9 sm:$0xff] %v938
      %1062 = vst [vmem:[%s987] ss:$9 sm:$0xff] %v939
      %v1063 = vld [vmem:[#allocation1] sm:$0xff]
      %1066 = vst [vmem:[#allocation1] ss:$9 sm:$0xff] %v940
      %1068 = vst [vmem:[%s993] ss:$9 sm:$0xff] %v941
      %1070 = vst [vmem:[%s996] ss:$9 sm:$0xff] %v942
      %1072 = vst [vmem:[%s999] ss:$9 sm:$0xff] %v943
      %1074 = vst [vmem:[%s978] ss:$9 sm:$0xff] %v944
      %1076 = vst [vmem:[%s981] ss:$9 sm:$0xff] %v945
      %1078 = vst [vmem:[%s984] ss:$9 sm:$0xff] %v946
      %1080 = vst [vmem:[%s987] ss:$9 sm:$0xff] %v947
      %v1081 = vld [vmem:[#allocation1] sm:$0xff]
      %1084 = vst [vmem:[#allocation1] ss:$9 sm:$0xff] %v948
      %1086 = vst [vmem:[%s993] ss:$9 sm:$0xff] %v949
      %1088 = vst [vmem:[%s996] ss:$9 sm:$0xff] %v950
      %1090 = vst [vmem:[%s999] ss:$9 sm:$0xff] %v951
      %1092 = vst [vmem:[%s978] ss:$9 sm:$0xff] %v952
      %1094 = vst [vmem:[%s981] ss:$9 sm:$0xff] %v953
      %1096 = vst [vmem:[%s984] ss:$9 sm:$0xff] %v954
      %1098 = vst [vmem:[%s987] ss:$9 sm:$0xff] %v955
      %v1099 = vld [vmem:[#allocation1] sm:$0xff]
      %1102 = vst [vmem:[#allocation1] ss:$9 sm:$0xff] %v956
      %1104 = vst [vmem:[%s993] ss:$9 sm:$0xff] %v957
      %1106 = vst [vmem:[%s996] ss:$9 sm:$0xff] %v958
      %1108 = vst [vmem:[%s999] ss:$9 sm:$0xff] %v959
      %1110 = vst [vmem:[%s978] ss:$9 sm:$0xff] %v960
      %1112 = vst [vmem:[%s981] ss:$9 sm:$0xff] %v961
      %1114 = vst [vmem:[%s984] ss:$9 sm:$0xff] %v962
      %1116 = vst [vmem:[%s987] ss:$9 sm:$0xff] %v963
      %v1117 = vld [vmem:[#allocation1] sm:$0xff]
      %1120 = vst [vmem:[#allocation1] ss:$9 sm:$0xff] %v964
      %1122 = vst [vmem:[%s993] ss:$9 sm:$0xff] %v965
      %1124 = vst [vmem:[%s996] ss:$9 sm:$0xff] %v966
      %1126 = vst [vmem:[%s999] ss:$9 sm:$0xff] %v967
      %1128 = vst [vmem:[%s978] ss:$9 sm:$0xff] %v968
      %1130 = vst [vmem:[%s981] ss:$9 sm:$0xff] %v969
      %1132 = vst [vmem:[%s984] ss:$9 sm:$0xff] %v970
      %1134 = vst [vmem:[%s987] ss:$9 sm:$0xff] %v971
      %v1135 = vld [vmem:[#allocation1] sm:$0xff]
      %1138 = vst [vmem:[#allocation1] ss:$9 sm:$0xff] %v972
      %1140 = vst [vmem:[%s993] ss:$9 sm:$0xff] %v973
      %1142 = vst [vmem:[%s996] ss:$9 sm:$0xff] %v974
      %1144 = vst [vmem:[%s999] ss:$9 sm:$0xff] %v975
      %1146 = vst [vmem:[%s978] ss:$9 sm:$0xff] %v786
      %v1147 = vld [vmem:[#allocation1] sm:$0xff]
      %v1150 = vpack.i.b16 %v865, %v865
      %v1151 = vpack.i.b16 %v867, %v866
      %v1152 = vpack.i.b16 %v869, %v868
      %v1153 = vpack.i.b16 %v871, %v870
      %v1154 = vpack.i.b16 %v873, %v872
      %v1155 = vpack.i.b16 %v875, %v874
      %v1156 = vpack.i.b16 %v877, %v876
      %v1157 = vpack.i.b16 %v879, %v878
      %v1158 = vpack.i.b16 %v881, %v880
      %s1161 = scalar_lea.vmem [#allocation1], 4
      %1162 = vst [vmem:[%s1161] ss:$9 sm:$0xff] %v1150
      %s1164 = scalar_lea.vmem [#allocation1], 5
      %1165 = vst [vmem:[%s1164] ss:$9 sm:$0xff] %v1151
      %s1167 = scalar_lea.vmem [#allocation1], 6
      %1168 = vst [vmem:[%s1167] ss:$9 sm:$0xff] %v1152
      %s1170 = scalar_lea.vmem [#allocation1], 7
      %1171 = vst [vmem:[%s1170] ss:$9 sm:$0xff] %v1153
      %v1172 = vld [vmem:[#allocation1] sm:$0xff]
      %1174 = vst [vmem:[#allocation1] ss:$9 sm:$0xff] %v1154
      %s1176 = scalar_lea.vmem [#allocation1], 1
      %1177 = vst [vmem:[%s1176] ss:$9 sm:$0xff] %v1155
      %s1179 = scalar_lea.vmem [#allocation1], 2
      %1180 = vst [vmem:[%s1179] ss:$9 sm:$0xff] %v1156
      %s1182 = scalar_lea.vmem [#allocation1], 3
      %1183 = vst [vmem:[%s1182] ss:$9 sm:$0xff] %v1157
      %1185 = vst [vmem:[%s1161] ss:$9 sm:$0xff] %v1158
      %1187 = vst [vmem:[%s1164] ss:$9 sm:$0xff] %v882
      %v1188 = vld [vmem:[#allocation1] sm:$0xff]
      %vm1191 = vcmask 1044480
      %vm1192 = vsmask.f32 4352
      %vm1193 = vmand %vm1191, %vm1192
      %v1194 = vsel %vm1193, %v902, %v989
      %v1195 = vsel %vm1193, %v1147, %v1172
      %v1196 = vld [vmem:[%s2] sm:$0xf]
      %s1197 = scalar_lea.vmem %s2, 4
      %v1198 = vld [vmem:[%s1197] sm:$0xf]
      %vm1199 = vsmask.f32 7424
      %v1201 = vshrl.u32 %v1194, 16
      %v1203 = vshll.u32 %v1194, 16
      %v1205 = vrot.slane %v1203, 1
      %v1206 = vor.u32 %v1201, %v1205
      %v1207 = vshll.u32 %v1009, 16
      %v1209 = vrot.slane %v1207, 1
      %v1210 = vsel %vm1199, %v1206, %v1209
      %v1211 = vshrl.u32 %v1009, 16
      %v1213 = vor.u32 %v1211, %v1209
      %v1214 = vshll.u32 %v1027, 16
      %v1216 = vrot.slane %v1214, 1
      %v1217 = vsel %vm1199, %v1213, %v1216
      %v1218 = vshrl.u32 %v1027, 16
      %v1220 = vor.u32 %v1218, %v1216
      %v1221 = vshll.u32 %v1045, 16
      %v1223 = vrot.slane %v1221, 1
      %v1224 = vsel %vm1199, %v1220, %v1223
      %v1225 = vshrl.u32 %v1045, 16
      %v1227 = vor.u32 %v1225, %v1223
      %v1228 = vshll.u32 %v1063, 16
      %v1230 = vrot.slane %v1228, 1
      %v1231 = vsel %vm1199, %v1227, %v1230
      %v1232 = vshrl.u32 %v1063, 16
      %v1234 = vor.u32 %v1232, %v1230
      %v1235 = vshll.u32 %v1081, 16
      %v1237 = vrot.slane %v1235, 1
      %v1238 = vsel %vm1199, %v1234, %v1237
      %v1239 = vshrl.u32 %v1081, 16
      %v1241 = vor.u32 %v1239, %v1237
      %v1242 = vshll.u32 %v1099, 16
      %v1244 = vrot.slane %v1242, 1
      %v1245 = vsel %vm1199, %v1241, %v1244
      %v1246 = vshrl.u32 %v1099, 16
      %v1248 = vor.u32 %v1246, %v1244
      %v1249 = vshll.u32 %v1117, 16
      %v1251 = vrot.slane %v1249, 1
      %v1252 = vsel %vm1199, %v1248, %v1251
      %v1253 = vshrl.u32 %v1117, 16
      %v1255 = vor.u32 %v1253, %v1251
      %v1256 = vshll.u32 %v1135, 16
      %v1258 = vrot.slane %v1256, 1
      %v1259 = vsel %vm1199, %v1255, %v1258
      %v1260 = vshrl.u32 %v1135, 16
      %v1262 = vor.u32 %v1260, %v1258
      %v1264 = vshll.u32 %v1195, 16
      %v1266 = vrot.slane %v1264, 1
      %v1267 = vsel %vm1199, %v1262, %v1266
      %vm1268 = vcmask 64512
      %v1270 = vsel %vm1268, %v1210, 0
      %v1273 = vsel %vm1268, %v1217, 0
      %v1276 = vsel %vm1268, %v1224, 0
      %v1279 = vsel %vm1268, %v1231, 0
      %v1282 = vsel %vm1268, %v1238, 0
      %v1285 = vsel %vm1268, %v1245, 0
      %v1288 = vsel %vm1268, %v1252, 0
      %v1291 = vsel %vm1268, %v1259, 0
      %v1294 = vsel %vm1268, %v1267, 0
      %vm1296 = vcmask 1043456
      %v1298 = vsel %vm1296, %v1198, 0
      %1300 = vmatpush.bf16.msra.mxu0 0
      %1301 = vmatpush.bf16.msra.mxu0 0
      %1302 = vmatpush.bf16.msra.mxu0 0
      %1303 = vmatpush.bf16.msra.mxu0 0
      %1304 = vmatpush.bf16.msra.mxu0 0
      %1305 = vmatpush.bf16.msra.mxu0 0
      %1306 = vmatpush.bf16.msra.mxu0 0
      %1307 = vmatpush.bf16.msra.mxu0 %v1298
      %1308 = vmatmul.bf16.gmra.mxu0 %v1270
      %v1309 = vpop.f32.mrf.mxu0
      %v1310 = vadd.f32 0.0, %v1309
      %v1311 = vpop.f32.mrf.mxu0
      %v1312 = vadd.f32 0.0, %v1311
      %1313 = vmatmul.bf16.gmra.mxu0 %v1273
      %v1314 = vpop.f32.mrf.mxu0
      %v1315 = vadd.f32 0.0, %v1314
      %v1316 = vpop.f32.mrf.mxu0
      %v1317 = vadd.f32 0.0, %v1316
      %1318 = vmatmul.bf16.gmra.mxu0 %v1276
      %v1319 = vpop.f32.mrf.mxu0
      %v1320 = vadd.f32 0.0, %v1319
      %v1321 = vpop.f32.mrf.mxu0
      %v1322 = vadd.f32 0.0, %v1321
      %1323 = vmatmul.bf16.gmra.mxu0 %v1279
      %v1324 = vpop.f32.mrf.mxu0
      %v1325 = vadd.f32 0.0, %v1324
      %v1326 = vpop.f32.mrf.mxu0
      %v1327 = vadd.f32 0.0, %v1326
      %1328 = vmatmul.bf16.gmra.mxu0 %v1282
      %v1329 = vpop.f32.mrf.mxu0
      %v1330 = vadd.f32 0.0, %v1329
      %v1331 = vpop.f32.mrf.mxu0
      %v1332 = vadd.f32 0.0, %v1331
      %1333 = vmatmul.bf16.gmra.mxu0 %v1285
      %v1334 = vpop.f32.mrf.mxu0
      %v1335 = vadd.f32 0.0, %v1334
      %v1336 = vpop.f32.mrf.mxu0
      %v1337 = vadd.f32 0.0, %v1336
      %1338 = vmatmul.bf16.gmra.mxu0 %v1288
      %v1339 = vpop.f32.mrf.mxu0
      %v1340 = vadd.f32 0.0, %v1339
      %v1341 = vpop.f32.mrf.mxu0
      %v1342 = vadd.f32 0.0, %v1341
      %1343 = vmatmul.bf16.gmra.mxu0 %v1291
      %v1344 = vpop.f32.mrf.mxu0
      %v1345 = vadd.f32 0.0, %v1344
      %v1346 = vpop.f32.mrf.mxu0
      %v1347 = vadd.f32 0.0, %v1346
      %1348 = vmatmul.bf16.gmra.mxu0 %v1294
      %v1349 = vpop.f32.mrf.mxu0
      %v1350 = vadd.f32 0.0, %v1349
      %v1351 = vpop.f32.mrf.mxu0
      %v1352 = vadd.f32 0.0, %v1351
      %1353 = vdwg.mxu0
      %v1354 = vsel %vm1268, %v1194, 0
      %v1356 = vsel %vm1268, %v1009, 0
      %v1358 = vsel %vm1268, %v1027, 0
      %v1360 = vsel %vm1268, %v1045, 0
      %v1362 = vsel %vm1268, %v1063, 0
      %v1364 = vsel %vm1268, %v1081, 0
      %v1366 = vsel %vm1268, %v1099, 0
      %v1368 = vsel %vm1268, %v1117, 0
      %v1370 = vsel %vm1268, %v1135, 0
      %v1373 = vsel %vm1296, %v1196, 0
      %1375 = vmatpush.bf16.msra.mxu0 0
      %1376 = vmatpush.bf16.msra.mxu0 0
      %1377 = vmatpush.bf16.msra.mxu0 0
      %1378 = vmatpush.bf16.msra.mxu0 0
      %1379 = vmatpush.bf16.msra.mxu0 0
      %1380 = vmatpush.bf16.msra.mxu0 0
      %1381 = vmatpush.bf16.msra.mxu0 0
      %1382 = vmatpush.bf16.msra.mxu0 %v1373
      %1383 = vmatmul.bf16.gmra.mxu0 %v1354
      %v1384 = vpop.f32.mrf.mxu0
      %v1385 = vadd.f32 %v1310, %v1384
      %v1386 = vpop.f32.mrf.mxu0
      %v1387 = vadd.f32 %v1312, %v1386
      %1388 = vmatmul.bf16.gmra.mxu0 %v1356
      %v1389 = vpop.f32.mrf.mxu0
      %v1390 = vadd.f32 %v1315, %v1389
      %v1391 = vpop.f32.mrf.mxu0
      %v1392 = vadd.f32 %v1317, %v1391
      %1393 = vmatmul.bf16.gmra.mxu0 %v1358
      %v1394 = vpop.f32.mrf.mxu0
      %v1395 = vadd.f32 %v1320, %v1394
      %v1396 = vpop.f32.mrf.mxu0
      %v1397 = vadd.f32 %v1322, %v1396
      %1398 = vmatmul.bf16.gmra.mxu0 %v1360
      %v1399 = vpop.f32.mrf.mxu0
      %v1400 = vadd.f32 %v1325, %v1399
      %v1401 = vpop.f32.mrf.mxu0
      %v1402 = vadd.f32 %v1327, %v1401
      %1403 = vmatmul.bf16.gmra.mxu0 %v1362
      %v1404 = vpop.f32.mrf.mxu0
      %v1405 = vadd.f32 %v1330, %v1404
      %v1406 = vpop.f32.mrf.mxu0
      %v1407 = vadd.f32 %v1332, %v1406
      %1408 = vmatmul.bf16.gmra.mxu0 %v1364
      %v1409 = vpop.f32.mrf.mxu0
      %v1410 = vadd.f32 %v1335, %v1409
      %v1411 = vpop.f32.mrf.mxu0
      %v1412 = vadd.f32 %v1337, %v1411
      %1413 = vmatmul.bf16.gmra.mxu0 %v1366
      %v1414 = vpop.f32.mrf.mxu0
      %v1415 = vadd.f32 %v1340, %v1414
      %v1416 = vpop.f32.mrf.mxu0
      %v1417 = vadd.f32 %v1342, %v1416
      %1418 = vmatmul.bf16.gmra.mxu0 %v1368
      %v1419 = vpop.f32.mrf.mxu0
      %v1420 = vadd.f32 %v1345, %v1419
      %v1421 = vpop.f32.mrf.mxu0
      %v1422 = vadd.f32 %v1347, %v1421
      %1423 = vmatmul.bf16.gmra.mxu0 %v1370
      %v1424 = vpop.f32.mrf.mxu0
      %v1425 = vadd.f32 %v1350, %v1424
      %v1426 = vpop.f32.mrf.mxu0
      %v1427 = vadd.f32 %v1352, %v1426
      %1428 = vdwg.mxu0
      %s1429 = scalar_lea.vmem %s2, 8
      %v1430 = vld [vmem:[%s1429] sm:$0xf]
      %vm1431 = vsmask.f32 3328
      %v1432 = vrot.slane %v1201, 4
      %v1433 = vrot.slane %v1203, 5
      %v1434 = vor.u32 %v1432, %v1433
      %v1435 = vrot.slane %v1211, 4
      %v1436 = vrot.slane %v1207, 5
      %v1437 = vor.u32 %v1435, %v1436
      %v1438 = vsel %vm1431, %v1434, %v1437
      %v1439 = vrot.slane %v1218, 4
      %v1440 = vrot.slane %v1214, 5
      %v1441 = vor.u32 %v1439, %v1440
      %v1442 = vsel %vm1431, %v1437, %v1441
      %v1443 = vrot.slane %v1225, 4
      %v1444 = vrot.slane %v1221, 5
      %v1445 = vor.u32 %v1443, %v1444
      %v1446 = vsel %vm1431, %v1441, %v1445
      %v1447 = vrot.slane %v1232, 4
      %v1448 = vrot.slane %v1228, 5
      %v1449 = vor.u32 %v1447, %v1448
      %v1450 = vsel %vm1431, %v1445, %v1449
      %v1451 = vrot.slane %v1239, 4
      %v1452 = vrot.slane %v1235, 5
      %v1453 = vor.u32 %v1451, %v1452
      %v1454 = vsel %vm1431, %v1449, %v1453
      %v1455 = vrot.slane %v1246, 4
      %v1456 = vrot.slane %v1242, 5
      %v1457 = vor.u32 %v1455, %v1456
      %v1458 = vsel %vm1431, %v1453, %v1457
      %v1459 = vrot.slane %v1253, 4
      %v1460 = vrot.slane %v1249, 5
      %v1461 = vor.u32 %v1459, %v1460
      %v1462 = vsel %vm1431, %v1457, %v1461
      %v1463 = vrot.slane %v1260, 4
      %v1464 = vrot.slane %v1256, 5
      %v1465 = vor.u32 %v1463, %v1464
      %v1466 = vsel %vm1431, %v1461, %v1465
      %v1467 = vshrl.u32 %v1195, 16
      %v1469 = vrot.slane %v1467, 4
      %v1470 = vrot.slane %v1264, 5
      %v1471 = vor.u32 %v1469, %v1470
      %v1472 = vsel %vm1431, %v1465, %v1471
      %v1474 = vsel %vm1268, %v1438, 0
      %v1477 = vsel %vm1268, %v1442, 0
      %v1480 = vsel %vm1268, %v1446, 0
      %v1483 = vsel %vm1268, %v1450, 0
      %v1486 = vsel %vm1268, %v1454, 0
      %v1489 = vsel %vm1268, %v1458, 0
      %v1492 = vsel %vm1268, %v1462, 0
      %v1495 = vsel %vm1268, %v1466, 0
      %v1498 = vsel %vm1268, %v1472, 0
      %v1501 = vsel %vm1296, %v1430, 0
      %1503 = vmatpush.bf16.msra.mxu0 0
      %1504 = vmatpush.bf16.msra.mxu0 0
      %1505 = vmatpush.bf16.msra.mxu0 0
      %1506 = vmatpush.bf16.msra.mxu0 0
      %1507 = vmatpush.bf16.msra.mxu0 0
      %1508 = vmatpush.bf16.msra.mxu0 0
      %1509 = vmatpush.bf16.msra.mxu0 0
      %1510 = vmatpush.bf16.msra.mxu0 %v1501
      %1511 = vmatmul.bf16.gmra.mxu0 %v1474
      %v1512 = vpop.f32.mrf.mxu0
      %v1513 = vadd.f32 0.0, %v1512
      %v1514 = vpop.f32.mrf.mxu0
      %v1515 = vadd.f32 0.0, %v1514
      %1516 = vmatmul.bf16.gmra.mxu0 %v1477
      %v1517 = vpop.f32.mrf.mxu0
      %v1518 = vadd.f32 0.0, %v1517
      %v1519 = vpop.f32.mrf.mxu0
      %v1520 = vadd.f32 0.0, %v1519
      %1521 = vmatmul.bf16.gmra.mxu0 %v1480
      %v1522 = vpop.f32.mrf.mxu0
      %v1523 = vadd.f32 0.0, %v1522
      %v1524 = vpop.f32.mrf.mxu0
      %v1525 = vadd.f32 0.0, %v1524
      %1526 = vmatmul.bf16.gmra.mxu0 %v1483
      %v1527 = vpop.f32.mrf.mxu0
      %v1528 = vadd.f32 0.0, %v1527
      %v1529 = vpop.f32.mrf.mxu0
      %v1530 = vadd.f32 0.0, %v1529
      %1531 = vmatmul.bf16.gmra.mxu0 %v1486
      %v1532 = vpop.f32.mrf.mxu0
      %v1533 = vadd.f32 0.0, %v1532
      %v1534 = vpop.f32.mrf.mxu0
      %v1535 = vadd.f32 0.0, %v1534
      %1536 = vmatmul.bf16.gmra.mxu0 %v1489
      %v1537 = vpop.f32.mrf.mxu0
      %v1538 = vadd.f32 0.0, %v1537
      %v1539 = vpop.f32.mrf.mxu0
      %v1540 = vadd.f32 0.0, %v1539
      %1541 = vmatmul.bf16.gmra.mxu0 %v1492
      %v1542 = vpop.f32.mrf.mxu0
      %v1543 = vadd.f32 0.0, %v1542
      %v1544 = vpop.f32.mrf.mxu0
      %v1545 = vadd.f32 0.0, %v1544
      %1546 = vmatmul.bf16.gmra.mxu0 %v1495
      %v1547 = vpop.f32.mrf.mxu0
      %v1548 = vadd.f32 0.0, %v1547
      %v1549 = vpop.f32.mrf.mxu0
      %v1550 = vadd.f32 0.0, %v1549
      %1551 = vmatmul.bf16.gmra.mxu0 %v1498
      %v1552 = vpop.f32.mrf.mxu0
      %v1553 = vadd.f32 0.0, %v1552
      %v1554 = vpop.f32.mrf.mxu0
      %v1555 = vadd.f32 0.0, %v1554
      %1556 = vdwg.mxu0
      %v1557 = vadd.f32 %v1385, %v1513
      %v1558 = vadd.f32 %v1387, %v1515
      %v1559 = vadd.f32 %v1390, %v1518
      %v1560 = vadd.f32 %v1392, %v1520
      %v1561 = vadd.f32 %v1395, %v1523
      %v1562 = vadd.f32 %v1397, %v1525
      %v1563 = vadd.f32 %v1400, %v1528
      %v1564 = vadd.f32 %v1402, %v1530
      %v1565 = vadd.f32 %v1405, %v1533
      %v1566 = vadd.f32 %v1407, %v1535
      %v1567 = vadd.f32 %v1410, %v1538
      %v1568 = vadd.f32 %v1412, %v1540
      %v1569 = vadd.f32 %v1415, %v1543
      %v1570 = vadd.f32 %v1417, %v1545
      %v1571 = vadd.f32 %v1420, %v1548
      %v1572 = vadd.f32 %v1422, %v1550
      %v1573 = vadd.f32 %v1425, %v1553
      %v1574 = vadd.f32 %v1427, %v1555
      %s1575 = scalar_lea.vmem %s2, 12
      %v1576 = vld [vmem:[%s1575] sm:$0xf]
      %vm1579 = vcmask 1042432
      %v1580 = vrot.slane %v1194, 5
      %v1581 = vrot.slane %v1009, 5
      %v1582 = vsel %vm1579, %v1580, %v1581
      %v1583 = vrot.slane %v1027, 5
      %v1584 = vsel %vm1579, %v1581, %v1583
      %v1585 = vrot.slane %v1045, 5
      %v1586 = vsel %vm1579, %v1583, %v1585
      %v1587 = vrot.slane %v1063, 5
      %v1588 = vsel %vm1579, %v1585, %v1587
      %v1589 = vrot.slane %v1081, 5
      %v1590 = vsel %vm1579, %v1587, %v1589
      %v1591 = vrot.slane %v1099, 5
      %v1592 = vsel %vm1579, %v1589, %v1591
      %v1593 = vrot.slane %v1117, 5
      %v1594 = vsel %vm1579, %v1591, %v1593
      %v1595 = vrot.slane %v1135, 5
      %v1596 = vsel %vm1579, %v1593, %v1595
      %v1597 = vrot.slane %v1195, 5
      %v1598 = vsel %vm1579, %v1595, %v1597
      %v1600 = vsel %vm1268, %v1582, 0
      %v1603 = vsel %vm1268, %v1584, 0
      %v1606 = vsel %vm1268, %v1586, 0
      %v1609 = vsel %vm1268, %v1588, 0
      %v1612 = vsel %vm1268, %v1590, 0
      %v1615 = vsel %vm1268, %v1592, 0
      %v1618 = vsel %vm1268, %v1594, 0
      %v1621 = vsel %vm1268, %v1596, 0
      %v1624 = vsel %vm1268, %v1598, 0
      %v1627 = vsel %vm1296, %v1576, 0
      %1629 = vmatpush.bf16.msra.mxu0 0
      %1630 = vmatpush.bf16.msra.mxu0 0
      %1631 = vmatpush.bf16.msra.mxu0 0
      %1632 = vmatpush.bf16.msra.mxu0 0
      %1633 = vmatpush.bf16.msra.mxu0 0
      %1634 = vmatpush.bf16.msra.mxu0 0
      %1635 = vmatpush.bf16.msra.mxu0 0
      %1636 = vmatpush.bf16.msra.mxu0 %v1627
      %1637 = vmatmul.bf16.gmra.mxu0 %v1600
      %v1638 = vpop.f32.mrf.mxu0
      %v1639 = vadd.f32 0.0, %v1638
      %v1640 = vpop.f32.mrf.mxu0
      %v1641 = vadd.f32 0.0, %v1640
      %1642 = vmatmul.bf16.gmra.mxu0 %v1603
      %v1643 = vpop.f32.mrf.mxu0
      %v1644 = vadd.f32 0.0, %v1643
      %v1645 = vpop.f32.mrf.mxu0
      %v1646 = vadd.f32 0.0, %v1645
      %1647 = vmatmul.bf16.gmra.mxu0 %v1606
      %v1648 = vpop.f32.mrf.mxu0
      %v1649 = vadd.f32 0.0, %v1648
      %v1650 = vpop.f32.mrf.mxu0
      %v1651 = vadd.f32 0.0, %v1650
      %1652 = vmatmul.bf16.gmra.mxu0 %v1609
      %v1653 = vpop.f32.mrf.mxu0
      %v1654 = vadd.f32 0.0, %v1653
      %v1655 = vpop.f32.mrf.mxu0
      %v1656 = vadd.f32 0.0, %v1655
      %1657 = vmatmul.bf16.gmra.mxu0 %v1612
      %v1658 = vpop.f32.mrf.mxu0
      %v1659 = vadd.f32 0.0, %v1658
      %v1660 = vpop.f32.mrf.mxu0
      %v1661 = vadd.f32 0.0, %v1660
      %1662 = vmatmul.bf16.gmra.mxu0 %v1615
      %v1663 = vpop.f32.mrf.mxu0
      %v1664 = vadd.f32 0.0, %v1663
      %v1665 = vpop.f32.mrf.mxu0
      %v1666 = vadd.f32 0.0, %v1665
      %1667 = vmatmul.bf16.gmra.mxu0 %v1618
      %v1668 = vpop.f32.mrf.mxu0
      %v1669 = vadd.f32 0.0, %v1668
      %v1670 = vpop.f32.mrf.mxu0
      %v1671 = vadd.f32 0.0, %v1670
      %1672 = vmatmul.bf16.gmra.mxu0 %v1621
      %v1673 = vpop.f32.mrf.mxu0
      %v1674 = vadd.f32 0.0, %v1673
      %v1675 = vpop.f32.mrf.mxu0
      %v1676 = vadd.f32 0.0, %v1675
      %1677 = vmatmul.bf16.gmra.mxu0 %v1624
      %v1678 = vpop.f32.mrf.mxu0
      %v1679 = vadd.f32 0.0, %v1678
      %v1680 = vpop.f32.mrf.mxu0
      %v1681 = vadd.f32 0.0, %v1680
      %1682 = vdwg.mxu0
      %v1683 = vadd.f32 %v1557, %v1639
      %v1684 = vadd.f32 %v1558, %v1641
      %v1685 = vadd.f32 %v1559, %v1644
      %v1686 = vadd.f32 %v1560, %v1646
      %v1687 = vadd.f32 %v1561, %v1649
      %v1688 = vadd.f32 %v1562, %v1651
      %v1689 = vadd.f32 %v1563, %v1654
      %v1690 = vadd.f32 %v1564, %v1656
      %v1691 = vadd.f32 %v1565, %v1659
      %v1692 = vadd.f32 %v1566, %v1661
      %v1693 = vadd.f32 %v1567, %v1664
      %v1694 = vadd.f32 %v1568, %v1666
      %v1695 = vadd.f32 %v1569, %v1669
      %v1696 = vadd.f32 %v1570, %v1671
      %v1697 = vadd.f32 %v1571, %v1674
      %v1698 = vadd.f32 %v1572, %v1676
      %v1699 = vadd.f32 %v1573, %v1679
      %v1700 = vadd.f32 %v1574, %v1681
      %s1701 = scalar_lea.vmem %s2, 16
      %v1702 = vld [vmem:[%s1701] sm:$0xf]
      %vm1703 = vcmask 1046528
      %v1704 = vrot.slane %v1009, 1
      %v1705 = vrot.slane %v1027, 1
      %v1706 = vsel %vm1703, %v1704, %v1705
      %v1707 = vrot.slane %v1045, 1
      %v1708 = vsel %vm1703, %v1705, %v1707
      %v1709 = vrot.slane %v1063, 1
      %v1710 = vsel %vm1703, %v1707, %v1709
      %v1711 = vrot.slane %v1081, 1
      %v1712 = vsel %vm1703, %v1709, %v1711
      %v1713 = vrot.slane %v1099, 1
      %v1714 = vsel %vm1703, %v1711, %v1713
      %v1715 = vrot.slane %v1117, 1
      %v1716 = vsel %vm1703, %v1713, %v1715
      %v1717 = vrot.slane %v1135, 1
      %v1718 = vsel %vm1703, %v1715, %v1717
      %v1719 = vrot.slane %v1195, 1
      %v1720 = vsel %vm1703, %v1717, %v1719
      %v1721 = vrot.slane %v1188, 1
      %v1722 = vsel %vm1703, %v1719, %v1721
      %v1724 = vsel %vm1268, %v1706, 0
      %v1727 = vsel %vm1268, %v1708, 0
      %v1730 = vsel %vm1268, %v1710, 0
      %v1733 = vsel %vm1268, %v1712, 0
      %v1736 = vsel %vm1268, %v1714, 0
      %v1739 = vsel %vm1268, %v1716, 0
      %v1742 = vsel %vm1268, %v1718, 0
      %v1745 = vsel %vm1268, %v1720, 0
      %v1748 = vsel %vm1268, %v1722, 0
      %v1751 = vsel %vm1296, %v1702, 0
      %1753 = vmatpush.bf16.msra.mxu0 0
      %1754 = vmatpush.bf16.msra.mxu0 0
      %1755 = vmatpush.bf16.msra.mxu0 0
      %1756 = vmatpush.bf16.msra.mxu0 0
      %1757 = vmatpush.bf16.msra.mxu0 0
      %1758 = vmatpush.bf16.msra.mxu0 0
      %1759 = vmatpush.bf16.msra.mxu0 0
      %1760 = vmatpush.bf16.msra.mxu0 %v1751
      %1761 = vmatmul.bf16.gmra.mxu0 %v1724
      %v1762 = vpop.f32.mrf.mxu0
      %v1763 = vadd.f32 0.0, %v1762
      %v1764 = vpop.f32.mrf.mxu0
      %v1765 = vadd.f32 0.0, %v1764
      %1766 = vmatmul.bf16.gmra.mxu0 %v1727
      %v1767 = vpop.f32.mrf.mxu0
      %v1768 = vadd.f32 0.0, %v1767
      %v1769 = vpop.f32.mrf.mxu0
      %v1770 = vadd.f32 0.0, %v1769
      %1771 = vmatmul.bf16.gmra.mxu0 %v1730
      %v1772 = vpop.f32.mrf.mxu0
      %v1773 = vadd.f32 0.0, %v1772
      %v1774 = vpop.f32.mrf.mxu0
      %v1775 = vadd.f32 0.0, %v1774
      %1776 = vmatmul.bf16.gmra.mxu0 %v1733
      %v1777 = vpop.f32.mrf.mxu0
      %v1778 = vadd.f32 0.0, %v1777
      %v1779 = vpop.f32.mrf.mxu0
      %v1780 = vadd.f32 0.0, %v1779
      %1781 = vmatmul.bf16.gmra.mxu0 %v1736
      %v1782 = vpop.f32.mrf.mxu0
      %v1783 = vadd.f32 0.0, %v1782
      %v1784 = vpop.f32.mrf.mxu0
      %v1785 = vadd.f32 0.0, %v1784
      %1786 = vmatmul.bf16.gmra.mxu0 %v1739
      %v1787 = vpop.f32.mrf.mxu0
      %v1788 = vadd.f32 0.0, %v1787
      %v1789 = vpop.f32.mrf.mxu0
      %v1790 = vadd.f32 0.0, %v1789
      %1791 = vmatmul.bf16.gmra.mxu0 %v1742
      %v1792 = vpop.f32.mrf.mxu0
      %v1793 = vadd.f32 0.0, %v1792
      %v1794 = vpop.f32.mrf.mxu0
      %v1795 = vadd.f32 0.0, %v1794
      %1796 = vmatmul.bf16.gmra.mxu0 %v1745
      %v1797 = vpop.f32.mrf.mxu0
      %v1798 = vadd.f32 0.0, %v1797
      %v1799 = vpop.f32.mrf.mxu0
      %v1800 = vadd.f32 0.0, %v1799
      %1801 = vmatmul.bf16.gmra.mxu0 %v1748
      %v1802 = vpop.f32.mrf.mxu0
      %v1803 = vadd.f32 0.0, %v1802
      %v1804 = vpop.f32.mrf.mxu0
      %v1805 = vadd.f32 0.0, %v1804
      %1806 = vdwg.mxu0
      %v1807 = vadd.f32 %v1683, %v1763
      %v1808 = vadd.f32 %v1684, %v1765
      %v1809 = vadd.f32 %v1685, %v1768
      %v1810 = vadd.f32 %v1686, %v1770
      %v1811 = vadd.f32 %v1687, %v1773
      %v1812 = vadd.f32 %v1688, %v1775
      %v1813 = vadd.f32 %v1689, %v1778
      %v1814 = vadd.f32 %v1690, %v1780
      %v1815 = vadd.f32 %v1691, %v1783
      %v1816 = vadd.f32 %v1692, %v1785
      %v1817 = vadd.f32 %v1693, %v1788
      %v1818 = vadd.f32 %v1694, %v1790
      %v1819 = vadd.f32 %v1695, %v1793
      %v1820 = vadd.f32 %v1696, %v1795
      %v1821 = vadd.f32 %v1697, %v1798
      %v1822 = vadd.f32 %v1698, %v1800
      %v1823 = vadd.f32 %v1699, %v1803
      %v1824 = vadd.f32 %v1700, %v1805
      %s1825 = scalar_lea.vmem %s2, 20
      %v1826 = vld [vmem:[%s1825] sm:$0xf]
      %vm1827 = vsmask.f32 6400
      %v1828 = vrot.slane %v1211, 1
      %v1829 = vrot.slane %v1207, 2
      %v1830 = vor.u32 %v1828, %v1829
      %v1831 = vrot.slane %v1218, 1
      %v1832 = vrot.slane %v1214, 2
      %v1833 = vor.u32 %v1831, %v1832
      %v1834 = vsel %vm1827, %v1830, %v1833
      %v1835 = vrot.slane %v1225, 1
      %v1836 = vrot.slane %v1221, 2
      %v1837 = vor.u32 %v1835, %v1836
      %v1838 = vsel %vm1827, %v1833, %v1837
      %v1839 = vrot.slane %v1232, 1
      %v1840 = vrot.slane %v1228, 2
      %v1841 = vor.u32 %v1839, %v1840
      %v1842 = vsel %vm1827, %v1837, %v1841
      %v1843 = vrot.slane %v1239, 1
      %v1844 = vrot.slane %v1235, 2
      %v1845 = vor.u32 %v1843, %v1844
      %v1846 = vsel %vm1827, %v1841, %v1845
      %v1847 = vrot.slane %v1246, 1
      %v1848 = vrot.slane %v1242, 2
      %v1849 = vor.u32 %v1847, %v1848
      %v1850 = vsel %vm1827, %v1845, %v1849
      %v1851 = vrot.slane %v1253, 1
      %v1852 = vrot.slane %v1249, 2
      %v1853 = vor.u32 %v1851, %v1852
      %v1854 = vsel %vm1827, %v1849, %v1853
      %v1855 = vrot.slane %v1260, 1
      %v1856 = vrot.slane %v1256, 2
      %v1857 = vor.u32 %v1855, %v1856
      %v1858 = vsel %vm1827, %v1853, %v1857
      %v1859 = vrot.slane %v1467, 1
      %v1860 = vrot.slane %v1264, 2
      %v1861 = vor.u32 %v1859, %v1860
      %v1862 = vsel %vm1827, %v1857, %v1861
      %v1863 = vshrl.u32 %v1188, 16
      %v1865 = vrot.slane %v1863, 1
      %v1866 = vshll.u32 %v1188, 16
      %v1868 = vrot.slane %v1866, 2
      %v1869 = vor.u32 %v1865, %v1868
      %v1870 = vsel %vm1827, %v1861, %v1869
      %v1872 = vsel %vm1268, %v1834, 0
      %v1875 = vsel %vm1268, %v1838, 0
      %v1878 = vsel %vm1268, %v1842, 0
      %v1881 = vsel %vm1268, %v1846, 0
      %v1884 = vsel %vm1268, %v1850, 0
      %v1887 = vsel %vm1268, %v1854, 0
      %v1890 = vsel %vm1268, %v1858, 0
      %v1893 = vsel %vm1268, %v1862, 0
      %v1896 = vsel %vm1268, %v1870, 0
      %v1899 = vsel %vm1296, %v1826, 0
      %1901 = vmatpush.bf16.msra.mxu0 0
      %1902 = vmatpush.bf16.msra.mxu0 0
      %1903 = vmatpush.bf16.msra.mxu0 0
      %1904 = vmatpush.bf16.msra.mxu0 0
      %1905 = vmatpush.bf16.msra.mxu0 0
      %1906 = vmatpush.bf16.msra.mxu0 0
      %1907 = vmatpush.bf16.msra.mxu0 0
      %1908 = vmatpush.bf16.msra.mxu0 %v1899
      %1909 = vmatmul.bf16.gmra.mxu0 %v1872
      %v1910 = vpop.f32.mrf.mxu0
      %v1911 = vadd.f32 0.0, %v1910
      %v1912 = vpop.f32.mrf.mxu0
      %v1913 = vadd.f32 0.0, %v1912
      %1914 = vmatmul.bf16.gmra.mxu0 %v1875
      %v1915 = vpop.f32.mrf.mxu0
      %v1916 = vadd.f32 0.0, %v1915
      %v1917 = vpop.f32.mrf.mxu0
      %v1918 = vadd.f32 0.0, %v1917
      %1919 = vmatmul.bf16.gmra.mxu0 %v1878
      %v1920 = vpop.f32.mrf.mxu0
      %v1921 = vadd.f32 0.0, %v1920
      %v1922 = vpop.f32.mrf.mxu0
      %v1923 = vadd.f32 0.0, %v1922
      %1924 = vmatmul.bf16.gmra.mxu0 %v1881
      %v1925 = vpop.f32.mrf.mxu0
      %v1926 = vadd.f32 0.0, %v1925
      %v1927 = vpop.f32.mrf.mxu0
      %v1928 = vadd.f32 0.0, %v1927
      %1929 = vmatmul.bf16.gmra.mxu0 %v1884
      %v1930 = vpop.f32.mrf.mxu0
      %v1931 = vadd.f32 0.0, %v1930
      %v1932 = vpop.f32.mrf.mxu0
      %v1933 = vadd.f32 0.0, %v1932
      %1934 = vmatmul.bf16.gmra.mxu0 %v1887
      %v1935 = vpop.f32.mrf.mxu0
      %v1936 = vadd.f32 0.0, %v1935
      %v1937 = vpop.f32.mrf.mxu0
      %v1938 = vadd.f32 0.0, %v1937
      %1939 = vmatmul.bf16.gmra.mxu0 %v1890
      %v1940 = vpop.f32.mrf.mxu0
      %v1941 = vadd.f32 0.0, %v1940
      %v1942 = vpop.f32.mrf.mxu0
      %v1943 = vadd.f32 0.0, %v1942
      %1944 = vmatmul.bf16.gmra.mxu0 %v1893
      %v1945 = vpop.f32.mrf.mxu0
      %v1946 = vadd.f32 0.0, %v1945
      %v1947 = vpop.f32.mrf.mxu0
      %v1948 = vadd.f32 0.0, %v1947
      %1949 = vmatmul.bf16.gmra.mxu0 %v1896
      %v1950 = vpop.f32.mrf.mxu0
      %v1951 = vadd.f32 0.0, %v1950
      %v1952 = vpop.f32.mrf.mxu0
      %v1953 = vadd.f32 0.0, %v1952
      %1954 = vdwg.mxu0
      %v1955 = vadd.f32 %v1807, %v1911
      %v1956 = vadd.f32 %v1808, %v1913
      %v1957 = vadd.f32 %v1809, %v1916
      %v1958 = vadd.f32 %v1810, %v1918
      %v1959 = vadd.f32 %v1811, %v1921
      %v1960 = vadd.f32 %v1812, %v1923
      %v1961 = vadd.f32 %v1813, %v1926
      %v1962 = vadd.f32 %v1814, %v1928
      %v1963 = vadd.f32 %v1815, %v1931
      %v1964 = vadd.f32 %v1816, %v1933
      %v1965 = vadd.f32 %v1817, %v1936
      %v1966 = vadd.f32 %v1818, %v1938
      %v1967 = vadd.f32 %v1819, %v1941
      %v1968 = vadd.f32 %v1820, %v1943
      %v1969 = vadd.f32 %v1821, %v1946
      %v1970 = vadd.f32 %v1822, %v1948
      %v1971 = vadd.f32 %v1823, %v1951
      %v1972 = vadd.f32 %v1824, %v1953
      %v1973 = vld [vmem:[%s4] sm:$0x1]
      %v1975 = vperm.slane %v1973, 0
      %v1977 = vadd.f32 %v1955, %v1975
      %v1978 = vadd.f32 %v1956, %v1975
      %v1979 = vadd.f32 %v1957, %v1975
      %v1980 = vadd.f32 %v1958, %v1975
      %v1981 = vadd.f32 %v1959, %v1975
      %v1982 = vadd.f32 %v1960, %v1975
      %v1983 = vadd.f32 %v1961, %v1975
      %v1984 = vadd.f32 %v1962, %v1975
      %v1985 = vadd.f32 %v1963, %v1975
      %v1986 = vadd.f32 %v1964, %v1975
      %v1987 = vadd.f32 %v1965, %v1975
      %v1988 = vadd.f32 %v1966, %v1975
      %v1989 = vadd.f32 %v1967, %v1975
      %v1990 = vadd.f32 %v1968, %v1975
      %v1991 = vadd.f32 %v1969, %v1975
      %v1992 = vadd.f32 %v1970, %v1975
      %v1993 = vadd.f32 %v1971, %v1975
      %v1994 = vadd.f32 %v1972, %v1975
      %v1995 = vlaneseq
      %v1996 = vand.u32 %v1995, 127
      %vm1997 = vcmp.lt.s32.totalorder %v1996, 16
      %v1998 = vmax.f32 %v1977, 0.0
      %v1999 = vmax.f32 %v1978, 0.0
      %v2000 = vmax.f32 %v1979, 0.0
      %v2001 = vmax.f32 %v1980, 0.0
      %v2002 = vmax.f32 %v1981, 0.0
      %v2003 = vmax.f32 %v1982, 0.0
      %v2004 = vmax.f32 %v1983, 0.0
      %v2005 = vmax.f32 %v1984, 0.0
      %v2006 = vmax.f32 %v1985, 0.0
      %v2007 = vmax.f32 %v1986, 0.0
      %v2008 = vmax.f32 %v1987, 0.0
      %v2009 = vmax.f32 %v1988, 0.0
      %v2010 = vmax.f32 %v1989, 0.0
      %v2011 = vmax.f32 %v1990, 0.0
      %v2012 = vmax.f32 %v1991, 0.0
      %v2013 = vmax.f32 %v1992, 0.0
      %v2014 = vmax.f32 %v1993, 0.0
      %v2015 = vmax.f32 %v1994, 0.0
      %v2016 = vsel %vm1997, %v1998, %v1977
      %v2017 = vsel %vm1997, %v1999, %v1978
      %v2018 = vsel %vm1997, %v2000, %v1979
      %v2019 = vsel %vm1997, %v2001, %v1980
      %v2020 = vsel %vm1997, %v2002, %v1981
      %v2021 = vsel %vm1997, %v2003, %v1982
      %v2022 = vsel %vm1997, %v2004, %v1983
      %v2023 = vsel %vm1997, %v2005, %v1984
      %v2024 = vsel %vm1997, %v2006, %v1985
      %v2025 = vsel %vm1997, %v2007, %v1986
      %v2026 = vsel %vm1997, %v2008, %v1987
      %v2027 = vsel %vm1997, %v2009, %v1988
      %v2028 = vsel %vm1997, %v2010, %v1989
      %v2029 = vsel %vm1997, %v2011, %v1990
      %v2030 = vsel %vm1997, %v2012, %v1991
      %v2031 = vsel %vm1997, %v2013, %v1992
      %v2032 = vsel %vm1997, %v2014, %v1993
      %v2033 = vsel %vm1997, %v2015, %v1994
      %v2034 = vmul.f32 %v2016, %v2016
      %v2035 = vmul.f32 %v2017, %v2017
      %v2036 = vmul.f32 %v2018, %v2018
      %v2037 = vmul.f32 %v2019, %v2019
      %v2038 = vmul.f32 %v2020, %v2020
      %v2039 = vmul.f32 %v2021, %v2021
      %v2040 = vmul.f32 %v2022, %v2022
      %v2041 = vmul.f32 %v2023, %v2023
      %v2042 = vmul.f32 %v2024, %v2024
      %v2043 = vmul.f32 %v2025, %v2025
      %v2044 = vmul.f32 %v2026, %v2026
      %v2045 = vmul.f32 %v2027, %v2027
      %v2046 = vmul.f32 %v2028, %v2028
      %v2047 = vmul.f32 %v2029, %v2029
      %v2048 = vmul.f32 %v2030, %v2030
      %v2049 = vmul.f32 %v2031, %v2031
      %v2050 = vmul.f32 %v2032, %v2032
      %v2051 = vmul.f32 %v2033, %v2033
      %v2052 = vsel %vm1268, %v2034, 0.0
      %2053 = vadd.xlane.f32.xlu0 %v2052
      %v2054 = vpop.xlane.xlu0 %2053
      %v2055 = vsel %vm1268, %v2035, 0.0
      %2056 = vadd.xlane.f32.xlu0 %v2055
      %v2057 = vpop.xlane.xlu0 %2056
      %v2058 = vsel %vm1268, %v2036, 0.0
      %2059 = vadd.xlane.f32.xlu0 %v2058
      %v2060 = vpop.xlane.xlu0 %2059
      %v2061 = vsel %vm1268, %v2037, 0.0
      %2062 = vadd.xlane.f32.xlu0 %v2061
      %v2063 = vpop.xlane.xlu0 %2062
      %v2064 = vsel %vm1268, %v2038, 0.0
      %2065 = vadd.xlane.f32.xlu0 %v2064
      %v2066 = vpop.xlane.xlu0 %2065
      %v2067 = vsel %vm1268, %v2039, 0.0
      %2068 = vadd.xlane.f32.xlu0 %v2067
      %v2069 = vpop.xlane.xlu0 %2068
      %v2070 = vsel %vm1268, %v2040, 0.0
      %2071 = vadd.xlane.f32.xlu0 %v2070
      %v2072 = vpop.xlane.xlu0 %2071
      %v2073 = vsel %vm1268, %v2041, 0.0
      %2074 = vadd.xlane.f32.xlu0 %v2073
      %v2075 = vpop.xlane.xlu0 %2074
      %v2076 = vsel %vm1268, %v2042, 0.0
      %2077 = vadd.xlane.f32.xlu0 %v2076
      %v2078 = vpop.xlane.xlu0 %2077
      %v2079 = vsel %vm1268, %v2043, 0.0
      %2080 = vadd.xlane.f32.xlu0 %v2079
      %v2081 = vpop.xlane.xlu0 %2080
      %v2082 = vsel %vm1268, %v2044, 0.0
      %2083 = vadd.xlane.f32.xlu0 %v2082
      %v2084 = vpop.xlane.xlu0 %2083
      %v2085 = vsel %vm1268, %v2045, 0.0
      %2086 = vadd.xlane.f32.xlu0 %v2085
      %v2087 = vpop.xlane.xlu0 %2086
      %v2088 = vsel %vm1268, %v2046, 0.0
      %2089 = vadd.xlane.f32.xlu0 %v2088
      %v2090 = vpop.xlane.xlu0 %2089
      %v2091 = vsel %vm1268, %v2047, 0.0
      %2092 = vadd.xlane.f32.xlu0 %v2091
      %v2093 = vpop.xlane.xlu0 %2092
      %v2094 = vsel %vm1268, %v2048, 0.0
      %2095 = vadd.xlane.f32.xlu0 %v2094
      %v2096 = vpop.xlane.xlu0 %2095
      %v2097 = vsel %vm1268, %v2049, 0.0
      %2098 = vadd.xlane.f32.xlu0 %v2097
      %v2099 = vpop.xlane.xlu0 %2098
      %v2100 = vsel %vm1268, %v2050, 0.0
      %2101 = vadd.xlane.f32.xlu0 %v2100
      %v2102 = vpop.xlane.xlu0 %2101
      %v2103 = vsel %vm1268, %v2051, 0.0
      %2104 = vadd.xlane.f32.xlu0 %v2103
      %v2105 = vpop.xlane.xlu0 %2104
      %v2106 = vmax.f32 %v2054, 1e-24
      %v2107 = vmax.f32 %v2057, 1e-24
      %v2108 = vmax.f32 %v2060, 1e-24
      %v2109 = vmax.f32 %v2063, 1e-24
      %v2110 = vmax.f32 %v2066, 1e-24
      %v2111 = vmax.f32 %v2069, 1e-24
      %v2112 = vmax.f32 %v2072, 1e-24
      %v2113 = vmax.f32 %v2075, 1e-24
      %v2114 = vmax.f32 %v2078, 1e-24
      %v2115 = vmax.f32 %v2081, 1e-24
      %v2116 = vmax.f32 %v2084, 1e-24
      %v2117 = vmax.f32 %v2087, 1e-24
      %v2118 = vmax.f32 %v2090, 1e-24
      %v2119 = vmax.f32 %v2093, 1e-24
      %v2120 = vmax.f32 %v2096, 1e-24
      %v2121 = vmax.f32 %v2099, 1e-24
      %v2122 = vmax.f32 %v2102, 1e-24
      %v2123 = vmax.f32 %v2105, 1e-24
      %v2124 = vrsqrt.pop %v2106
      %v2125 = vmul.f32 %v2124, %v2106
      %v2126 = vmul.f32 %v2125, %v2124
      %v2127 = vmul.f32 0.5, %v2126
      %v2128 = vsub.f32 1.5, %v2127
      %v2129 = vmul.f32 %v2124, %v2128
      %vm2130 = vweird.f32 %v2106
      %vm2131 = vweird.f32 %v2124
      %vm2132 = vmor %vm2130, %vm2131
      %v2133 = vsel %vm2132, %v2124, %v2129
      %v2134 = vrsqrt.pop %v2107
      %v2135 = vmul.f32 %v2134, %v2107
      %v2136 = vmul.f32 %v2135, %v2134
      %v2137 = vmul.f32 0.5, %v2136
      %v2138 = vsub.f32 1.5, %v2137
      %v2139 = vmul.f32 %v2134, %v2138
      %vm2140 = vweird.f32 %v2107
      %vm2141 = vweird.f32 %v2134
      %vm2142 = vmor %vm2140, %vm2141
      %v2143 = vsel %vm2142, %v2134, %v2139
      %v2144 = vrsqrt.pop %v2108
      %v2145 = vmul.f32 %v2144, %v2108
      %v2146 = vmul.f32 %v2145, %v2144
      %v2147 = vmul.f32 0.5, %v2146
      %v2148 = vsub.f32 1.5, %v2147
      %v2149 = vmul.f32 %v2144, %v2148
      %vm2150 = vweird.f32 %v2108
      %vm2151 = vweird.f32 %v2144
      %vm2152 = vmor %vm2150, %vm2151
      %v2153 = vsel %vm2152, %v2144, %v2149
      %v2154 = vrsqrt.pop %v2109
      %v2155 = vmul.f32 %v2154, %v2109
      %v2156 = vmul.f32 %v2155, %v2154
      %v2157 = vmul.f32 0.5, %v2156
      %v2158 = vsub.f32 1.5, %v2157
      %v2159 = vmul.f32 %v2154, %v2158
      %vm2160 = vweird.f32 %v2109
      %vm2161 = vweird.f32 %v2154
      %vm2162 = vmor %vm2160, %vm2161
      %v2163 = vsel %vm2162, %v2154, %v2159
      %v2164 = vrsqrt.pop %v2110
      %v2165 = vmul.f32 %v2164, %v2110
      %v2166 = vmul.f32 %v2165, %v2164
      %v2167 = vmul.f32 0.5, %v2166
      %v2168 = vsub.f32 1.5, %v2167
      %v2169 = vmul.f32 %v2164, %v2168
      %vm2170 = vweird.f32 %v2110
      %vm2171 = vweird.f32 %v2164
      %vm2172 = vmor %vm2170, %vm2171
      %v2173 = vsel %vm2172, %v2164, %v2169
      %v2174 = vrsqrt.pop %v2111
      %v2175 = vmul.f32 %v2174, %v2111
      %v2176 = vmul.f32 %v2175, %v2174
      %v2177 = vmul.f32 0.5, %v2176
      %v2178 = vsub.f32 1.5, %v2177
      %v2179 = vmul.f32 %v2174, %v2178
      %vm2180 = vweird.f32 %v2111
      %vm2181 = vweird.f32 %v2174
      %vm2182 = vmor %vm2180, %vm2181
      %v2183 = vsel %vm2182, %v2174, %v2179
      %v2184 = vrsqrt.pop %v2112
      %v2185 = vmul.f32 %v2184, %v2112
      %v2186 = vmul.f32 %v2185, %v2184
      %v2187 = vmul.f32 0.5, %v2186
      %v2188 = vsub.f32 1.5, %v2187
      %v2189 = vmul.f32 %v2184, %v2188
      %vm2190 = vweird.f32 %v2112
      %vm2191 = vweird.f32 %v2184
      %vm2192 = vmor %vm2190, %vm2191
      %v2193 = vsel %vm2192, %v2184, %v2189
      %v2194 = vrsqrt.pop %v2113
      %v2195 = vmul.f32 %v2194, %v2113
      %v2196 = vmul.f32 %v2195, %v2194
      %v2197 = vmul.f32 0.5, %v2196
      %v2198 = vsub.f32 1.5, %v2197
      %v2199 = vmul.f32 %v2194, %v2198
      %vm2200 = vweird.f32 %v2113
      %vm2201 = vweird.f32 %v2194
      %vm2202 = vmor %vm2200, %vm2201
      %v2203 = vsel %vm2202, %v2194, %v2199
      %v2204 = vrsqrt.pop %v2114
      %v2205 = vmul.f32 %v2204, %v2114
      %v2206 = vmul.f32 %v2205, %v2204
      %v2207 = vmul.f32 0.5, %v2206
      %v2208 = vsub.f32 1.5, %v2207
      %v2209 = vmul.f32 %v2204, %v2208
      %vm2210 = vweird.f32 %v2114
      %vm2211 = vweird.f32 %v2204
      %vm2212 = vmor %vm2210, %vm2211
      %v2213 = vsel %vm2212, %v2204, %v2209
      %v2214 = vrsqrt.pop %v2115
      %v2215 = vmul.f32 %v2214, %v2115
      %v2216 = vmul.f32 %v2215, %v2214
      %v2217 = vmul.f32 0.5, %v2216
      %v2218 = vsub.f32 1.5, %v2217
      %v2219 = vmul.f32 %v2214, %v2218
      %vm2220 = vweird.f32 %v2115
      %vm2221 = vweird.f32 %v2214
      %vm2222 = vmor %vm2220, %vm2221
      %v2223 = vsel %vm2222, %v2214, %v2219
      %v2224 = vrsqrt.pop %v2116
      %v2225 = vmul.f32 %v2224, %v2116
      %v2226 = vmul.f32 %v2225, %v2224
      %v2227 = vmul.f32 0.5, %v2226
      %v2228 = vsub.f32 1.5, %v2227
      %v2229 = vmul.f32 %v2224, %v2228
      %vm2230 = vweird.f32 %v2116
      %vm2231 = vweird.f32 %v2224
      %vm2232 = vmor %vm2230, %vm2231
      %v2233 = vsel %vm2232, %v2224, %v2229
      %v2234 = vrsqrt.pop %v2117
      %v2235 = vmul.f32 %v2234, %v2117
      %v2236 = vmul.f32 %v2235, %v2234
      %v2237 = vmul.f32 0.5, %v2236
      %v2238 = vsub.f32 1.5, %v2237
      %v2239 = vmul.f32 %v2234, %v2238
      %vm2240 = vweird.f32 %v2117
      %vm2241 = vweird.f32 %v2234
      %vm2242 = vmor %vm2240, %vm2241
      %v2243 = vsel %vm2242, %v2234, %v2239
      %v2244 = vrsqrt.pop %v2118
      %v2245 = vmul.f32 %v2244, %v2118
      %v2246 = vmul.f32 %v2245, %v2244
      %v2247 = vmul.f32 0.5, %v2246
      %v2248 = vsub.f32 1.5, %v2247
      %v2249 = vmul.f32 %v2244, %v2248
      %vm2250 = vweird.f32 %v2118
      %vm2251 = vweird.f32 %v2244
      %vm2252 = vmor %vm2250, %vm2251
      %v2253 = vsel %vm2252, %v2244, %v2249
      %v2254 = vrsqrt.pop %v2119
      %v2255 = vmul.f32 %v2254, %v2119
      %v2256 = vmul.f32 %v2255, %v2254
      %v2257 = vmul.f32 0.5, %v2256
      %v2258 = vsub.f32 1.5, %v2257
      %v2259 = vmul.f32 %v2254, %v2258
      %vm2260 = vweird.f32 %v2119
      %vm2261 = vweird.f32 %v2254
      %vm2262 = vmor %vm2260, %vm2261
      %v2263 = vsel %vm2262, %v2254, %v2259
      %v2264 = vrsqrt.pop %v2120
      %v2265 = vmul.f32 %v2264, %v2120
      %v2266 = vmul.f32 %v2265, %v2264
      %v2267 = vmul.f32 0.5, %v2266
      %v2268 = vsub.f32 1.5, %v2267
      %v2269 = vmul.f32 %v2264, %v2268
      %vm2270 = vweird.f32 %v2120
      %vm2271 = vweird.f32 %v2264
      %vm2272 = vmor %vm2270, %vm2271
      %v2273 = vsel %vm2272, %v2264, %v2269
      %v2274 = vrsqrt.pop %v2121
      %v2275 = vmul.f32 %v2274, %v2121
      %v2276 = vmul.f32 %v2275, %v2274
      %v2277 = vmul.f32 0.5, %v2276
      %v2278 = vsub.f32 1.5, %v2277
      %v2279 = vmul.f32 %v2274, %v2278
      %vm2280 = vweird.f32 %v2121
      %vm2281 = vweird.f32 %v2274
      %vm2282 = vmor %vm2280, %vm2281
      %v2283 = vsel %vm2282, %v2274, %v2279
      %v2284 = vrsqrt.pop %v2122
      %v2285 = vmul.f32 %v2284, %v2122
      %v2286 = vmul.f32 %v2285, %v2284
      %v2287 = vmul.f32 0.5, %v2286
      %v2288 = vsub.f32 1.5, %v2287
      %v2289 = vmul.f32 %v2284, %v2288
      %vm2290 = vweird.f32 %v2122
      %vm2291 = vweird.f32 %v2284
      %vm2292 = vmor %vm2290, %vm2291
      %v2293 = vsel %vm2292, %v2284, %v2289
      %v2294 = vrsqrt.pop %v2123
      %v2295 = vmul.f32 %v2294, %v2123
      %v2296 = vmul.f32 %v2295, %v2294
      %v2297 = vmul.f32 0.5, %v2296
      %v2298 = vsub.f32 1.5, %v2297
      %v2299 = vmul.f32 %v2294, %v2298
      %vm2300 = vweird.f32 %v2123
      %vm2301 = vweird.f32 %v2294
      %vm2302 = vmor %vm2300, %vm2301
      %v2303 = vsel %vm2302, %v2294, %v2299
      %2322 = vrot.lane.b32.xlu0 %v2034, 120
      %v2323 = vpop.permute.xlu0 %2322
      %2324 = vrot.lane.b32.xlu0 %v2035, 120
      %v2325 = vpop.permute.xlu0 %2324
      %2326 = vrot.lane.b32.xlu0 %v2036, 120
      %v2327 = vpop.permute.xlu0 %2326
      %2328 = vrot.lane.b32.xlu0 %v2037, 120
      %v2329 = vpop.permute.xlu0 %2328
      %2330 = vrot.lane.b32.xlu0 %v2038, 120
      %v2331 = vpop.permute.xlu0 %2330
      %2332 = vrot.lane.b32.xlu0 %v2039, 120
      %v2333 = vpop.permute.xlu0 %2332
      %2334 = vrot.lane.b32.xlu0 %v2040, 120
      %v2335 = vpop.permute.xlu0 %2334
      %2336 = vrot.lane.b32.xlu0 %v2041, 120
      %v2337 = vpop.permute.xlu0 %2336
      %2338 = vrot.lane.b32.xlu0 %v2042, 120
      %v2339 = vpop.permute.xlu0 %2338
      %2340 = vrot.lane.b32.xlu0 %v2043, 120
      %v2341 = vpop.permute.xlu0 %2340
      %2342 = vrot.lane.b32.xlu0 %v2044, 120
      %v2343 = vpop.permute.xlu0 %2342
      %2344 = vrot.lane.b32.xlu0 %v2045, 120
      %v2345 = vpop.permute.xlu0 %2344
      %2346 = vrot.lane.b32.xlu0 %v2046, 120
      %v2347 = vpop.permute.xlu0 %2346
      %2348 = vrot.lane.b32.xlu0 %v2047, 120
      %v2349 = vpop.permute.xlu0 %2348
      %2350 = vrot.lane.b32.xlu0 %v2048, 120
      %v2351 = vpop.permute.xlu0 %2350
      %2352 = vrot.lane.b32.xlu0 %v2049, 120
      %v2353 = vpop.permute.xlu0 %2352
      %2354 = vrot.lane.b32.xlu0 %v2050, 120
      %v2355 = vpop.permute.xlu0 %2354
      %2356 = vrot.lane.b32.xlu0 %v2051, 120
      %v2357 = vpop.permute.xlu0 %2356
      %v2376 = vsel %vm1268, %v2323, 0.0
      %2377 = vadd.xlane.f32.xlu0 %v2376
      %v2378 = vpop.xlane.xlu0 %2377
      %v2379 = vsel %vm1268, %v2325, 0.0
      %2380 = vadd.xlane.f32.xlu0 %v2379
      %v2381 = vpop.xlane.xlu0 %2380
      %v2382 = vsel %vm1268, %v2327, 0.0
      %2383 = vadd.xlane.f32.xlu0 %v2382
      %v2384 = vpop.xlane.xlu0 %2383
      %v2385 = vsel %vm1268, %v2329, 0.0
      %2386 = vadd.xlane.f32.xlu0 %v2385
      %v2387 = vpop.xlane.xlu0 %2386
      %v2388 = vsel %vm1268, %v2331, 0.0
      %2389 = vadd.xlane.f32.xlu0 %v2388
      %v2390 = vpop.xlane.xlu0 %2389
      %v2391 = vsel %vm1268, %v2333, 0.0
      %2392 = vadd.xlane.f32.xlu0 %v2391
      %v2393 = vpop.xlane.xlu0 %2392
      %v2394 = vsel %vm1268, %v2335, 0.0
      %2395 = vadd.xlane.f32.xlu0 %v2394
      %v2396 = vpop.xlane.xlu0 %2395
      %v2397 = vsel %vm1268, %v2337, 0.0
      %2398 = vadd.xlane.f32.xlu0 %v2397
      %v2399 = vpop.xlane.xlu0 %2398
      %v2400 = vsel %vm1268, %v2339, 0.0
      %2401 = vadd.xlane.f32.xlu0 %v2400
      %v2402 = vpop.xlane.xlu0 %2401
      %v2403 = vsel %vm1268, %v2341, 0.0
      %2404 = vadd.xlane.f32.xlu0 %v2403
      %v2405 = vpop.xlane.xlu0 %2404
      %v2406 = vsel %vm1268, %v2343, 0.0
      %2407 = vadd.xlane.f32.xlu0 %v2406
      %v2408 = vpop.xlane.xlu0 %2407
      %v2409 = vsel %vm1268, %v2345, 0.0
      %2410 = vadd.xlane.f32.xlu0 %v2409
      %v2411 = vpop.xlane.xlu0 %2410
      %v2412 = vsel %vm1268, %v2347, 0.0
      %2413 = vadd.xlane.f32.xlu0 %v2412
      %v2414 = vpop.xlane.xlu0 %2413
      %v2415 = vsel %vm1268, %v2349, 0.0
      %2416 = vadd.xlane.f32.xlu0 %v2415
      %v2417 = vpop.xlane.xlu0 %2416
      %v2418 = vsel %vm1268, %v2351, 0.0
      %2419 = vadd.xlane.f32.xlu0 %v2418
      %v2420 = vpop.xlane.xlu0 %2419
      %v2421 = vsel %vm1268, %v2353, 0.0
      %2422 = vadd.xlane.f32.xlu0 %v2421
      %v2423 = vpop.xlane.xlu0 %2422
      %v2424 = vsel %vm1268, %v2355, 0.0
      %2425 = vadd.xlane.f32.xlu0 %v2424
      %v2426 = vpop.xlane.xlu0 %2425
      %v2427 = vsel %vm1268, %v2357, 0.0
      %2428 = vadd.xlane.f32.xlu0 %v2427
      %v2429 = vpop.xlane.xlu0 %2428
      %v2430 = vmax.f32 %v2378, 1e-24
      %v2431 = vmax.f32 %v2381, 1e-24
      %v2432 = vmax.f32 %v2384, 1e-24
      %v2433 = vmax.f32 %v2387, 1e-24
      %v2434 = vmax.f32 %v2390, 1e-24
      %v2435 = vmax.f32 %v2393, 1e-24
      %v2436 = vmax.f32 %v2396, 1e-24
      %v2437 = vmax.f32 %v2399, 1e-24
      %v2438 = vmax.f32 %v2402, 1e-24
      %v2439 = vmax.f32 %v2405, 1e-24
      %v2440 = vmax.f32 %v2408, 1e-24
      %v2441 = vmax.f32 %v2411, 1e-24
      %v2442 = vmax.f32 %v2414, 1e-24
      %v2443 = vmax.f32 %v2417, 1e-24
      %v2444 = vmax.f32 %v2420, 1e-24
      %v2445 = vmax.f32 %v2423, 1e-24
      %v2446 = vmax.f32 %v2426, 1e-24
      %v2447 = vmax.f32 %v2429, 1e-24
      %v2448 = vrsqrt.pop %v2430
      %v2449 = vmul.f32 %v2448, %v2430
      %v2450 = vmul.f32 %v2449, %v2448
      %v2451 = vmul.f32 0.5, %v2450
      %v2452 = vsub.f32 1.5, %v2451
      %v2453 = vmul.f32 %v2448, %v2452
      %vm2454 = vweird.f32 %v2430
      %vm2455 = vweird.f32 %v2448
      %vm2456 = vmor %vm2454, %vm2455
      %v2457 = vsel %vm2456, %v2448, %v2453
      %v2458 = vrsqrt.pop %v2431
      %v2459 = vmul.f32 %v2458, %v2431
      %v2460 = vmul.f32 %v2459, %v2458
      %v2461 = vmul.f32 0.5, %v2460
      %v2462 = vsub.f32 1.5, %v2461
      %v2463 = vmul.f32 %v2458, %v2462
      %vm2464 = vweird.f32 %v2431
      %vm2465 = vweird.f32 %v2458
      %vm2466 = vmor %vm2464, %vm2465
      %v2467 = vsel %vm2466, %v2458, %v2463
      %v2468 = vrsqrt.pop %v2432
      %v2469 = vmul.f32 %v2468, %v2432
      %v2470 = vmul.f32 %v2469, %v2468
      %v2471 = vmul.f32 0.5, %v2470
      %v2472 = vsub.f32 1.5, %v2471
      %v2473 = vmul.f32 %v2468, %v2472
      %vm2474 = vweird.f32 %v2432
      %vm2475 = vweird.f32 %v2468
      %vm2476 = vmor %vm2474, %vm2475
      %v2477 = vsel %vm2476, %v2468, %v2473
      %v2478 = vrsqrt.pop %v2433
      %v2479 = vmul.f32 %v2478, %v2433
      %v2480 = vmul.f32 %v2479, %v2478
      %v2481 = vmul.f32 0.5, %v2480
      %v2482 = vsub.f32 1.5, %v2481
      %v2483 = vmul.f32 %v2478, %v2482
      %vm2484 = vweird.f32 %v2433
      %vm2485 = vweird.f32 %v2478
      %vm2486 = vmor %vm2484, %vm2485
      %v2487 = vsel %vm2486, %v2478, %v2483
      %v2488 = vrsqrt.pop %v2434
      %v2489 = vmul.f32 %v2488, %v2434
      %v2490 = vmul.f32 %v2489, %v2488
      %v2491 = vmul.f32 0.5, %v2490
      %v2492 = vsub.f32 1.5, %v2491
      %v2493 = vmul.f32 %v2488, %v2492
      %vm2494 = vweird.f32 %v2434
      %vm2495 = vweird.f32 %v2488
      %vm2496 = vmor %vm2494, %vm2495
      %v2497 = vsel %vm2496, %v2488, %v2493
      %v2498 = vrsqrt.pop %v2435
      %v2499 = vmul.f32 %v2498, %v2435
      %v2500 = vmul.f32 %v2499, %v2498
      %v2501 = vmul.f32 0.5, %v2500
      %v2502 = vsub.f32 1.5, %v2501
      %v2503 = vmul.f32 %v2498, %v2502
      %vm2504 = vweird.f32 %v2435
      %vm2505 = vweird.f32 %v2498
      %vm2506 = vmor %vm2504, %vm2505
      %v2507 = vsel %vm2506, %v2498, %v2503
      %v2508 = vrsqrt.pop %v2436
      %v2509 = vmul.f32 %v2508, %v2436
      %v2510 = vmul.f32 %v2509, %v2508
      %v2511 = vmul.f32 0.5, %v2510
      %v2512 = vsub.f32 1.5, %v2511
      %v2513 = vmul.f32 %v2508, %v2512
      %vm2514 = vweird.f32 %v2436
      %vm2515 = vweird.f32 %v2508
      %vm2516 = vmor %vm2514, %vm2515
      %v2517 = vsel %vm2516, %v2508, %v2513
      %v2518 = vrsqrt.pop %v2437
      %v2519 = vmul.f32 %v2518, %v2437
      %v2520 = vmul.f32 %v2519, %v2518
      %v2521 = vmul.f32 0.5, %v2520
      %v2522 = vsub.f32 1.5, %v2521
      %v2523 = vmul.f32 %v2518, %v2522
      %vm2524 = vweird.f32 %v2437
      %vm2525 = vweird.f32 %v2518
      %vm2526 = vmor %vm2524, %vm2525
      %v2527 = vsel %vm2526, %v2518, %v2523
      %v2528 = vrsqrt.pop %v2438
      %v2529 = vmul.f32 %v2528, %v2438
      %v2530 = vmul.f32 %v2529, %v2528
      %v2531 = vmul.f32 0.5, %v2530
      %v2532 = vsub.f32 1.5, %v2531
      %v2533 = vmul.f32 %v2528, %v2532
      %vm2534 = vweird.f32 %v2438
      %vm2535 = vweird.f32 %v2528
      %vm2536 = vmor %vm2534, %vm2535
      %v2537 = vsel %vm2536, %v2528, %v2533
      %v2538 = vrsqrt.pop %v2439
      %v2539 = vmul.f32 %v2538, %v2439
      %v2540 = vmul.f32 %v2539, %v2538
      %v2541 = vmul.f32 0.5, %v2540
      %v2542 = vsub.f32 1.5, %v2541
      %v2543 = vmul.f32 %v2538, %v2542
      %vm2544 = vweird.f32 %v2439
      %vm2545 = vweird.f32 %v2538
      %vm2546 = vmor %vm2544, %vm2545
      %v2547 = vsel %vm2546, %v2538, %v2543
      %v2548 = vrsqrt.pop %v2440
      %v2549 = vmul.f32 %v2548, %v2440
      %v2550 = vmul.f32 %v2549, %v2548
      %v2551 = vmul.f32 0.5, %v2550
      %v2552 = vsub.f32 1.5, %v2551
      %v2553 = vmul.f32 %v2548, %v2552
      %vm2554 = vweird.f32 %v2440
      %vm2555 = vweird.f32 %v2548
      %vm2556 = vmor %vm2554, %vm2555
      %v2557 = vsel %vm2556, %v2548, %v2553
      %v2558 = vrsqrt.pop %v2441
      %v2559 = vmul.f32 %v2558, %v2441
      %v2560 = vmul.f32 %v2559, %v2558
      %v2561 = vmul.f32 0.5, %v2560
      %v2562 = vsub.f32 1.5, %v2561
      %v2563 = vmul.f32 %v2558, %v2562
      %vm2564 = vweird.f32 %v2441
      %vm2565 = vweird.f32 %v2558
      %vm2566 = vmor %vm2564, %vm2565
      %v2567 = vsel %vm2566, %v2558, %v2563
      %v2568 = vrsqrt.pop %v2442
      %v2569 = vmul.f32 %v2568, %v2442
      %v2570 = vmul.f32 %v2569, %v2568
      %v2571 = vmul.f32 0.5, %v2570
      %v2572 = vsub.f32 1.5, %v2571
      %v2573 = vmul.f32 %v2568, %v2572
      %vm2574 = vweird.f32 %v2442
      %vm2575 = vweird.f32 %v2568
      %vm2576 = vmor %vm2574, %vm2575
      %v2577 = vsel %vm2576, %v2568, %v2573
      %v2578 = vrsqrt.pop %v2443
      %v2579 = vmul.f32 %v2578, %v2443
      %v2580 = vmul.f32 %v2579, %v2578
      %v2581 = vmul.f32 0.5, %v2580
      %v2582 = vsub.f32 1.5, %v2581
      %v2583 = vmul.f32 %v2578, %v2582
      %vm2584 = vweird.f32 %v2443
      %vm2585 = vweird.f32 %v2578
      %vm2586 = vmor %vm2584, %vm2585
      %v2587 = vsel %vm2586, %v2578, %v2583
      %v2588 = vrsqrt.pop %v2444
      %v2589 = vmul.f32 %v2588, %v2444
      %v2590 = vmul.f32 %v2589, %v2588
      %v2591 = vmul.f32 0.5, %v2590
      %v2592 = vsub.f32 1.5, %v2591
      %v2593 = vmul.f32 %v2588, %v2592
      %vm2594 = vweird.f32 %v2444
      %vm2595 = vweird.f32 %v2588
      %vm2596 = vmor %vm2594, %vm2595
      %v2597 = vsel %vm2596, %v2588, %v2593
      %v2598 = vrsqrt.pop %v2445
      %v2599 = vmul.f32 %v2598, %v2445
      %v2600 = vmul.f32 %v2599, %v2598
      %v2601 = vmul.f32 0.5, %v2600
      %v2602 = vsub.f32 1.5, %v2601
      %v2603 = vmul.f32 %v2598, %v2602
      %vm2604 = vweird.f32 %v2445
      %vm2605 = vweird.f32 %v2598
      %vm2606 = vmor %vm2604, %vm2605
      %v2607 = vsel %vm2606, %v2598, %v2603
      %v2608 = vrsqrt.pop %v2446
      %v2609 = vmul.f32 %v2608, %v2446
      %v2610 = vmul.f32 %v2609, %v2608
      %v2611 = vmul.f32 0.5, %v2610
      %v2612 = vsub.f32 1.5, %v2611
      %v2613 = vmul.f32 %v2608, %v2612
      %vm2614 = vweird.f32 %v2446
      %vm2615 = vweird.f32 %v2608
      %vm2616 = vmor %vm2614, %vm2615
      %v2617 = vsel %vm2616, %v2608, %v2613
      %v2618 = vrsqrt.pop %v2447
      %v2619 = vmul.f32 %v2618, %v2447
      %v2620 = vmul.f32 %v2619, %v2618
      %v2621 = vmul.f32 0.5, %v2620
      %v2622 = vsub.f32 1.5, %v2621
      %v2623 = vmul.f32 %v2618, %v2622
      %vm2624 = vweird.f32 %v2447
      %vm2625 = vweird.f32 %v2618
      %vm2626 = vmor %vm2624, %vm2625
      %v2627 = vsel %vm2626, %v2618, %v2623
      %vm2628 = vcmp.lt.s32.totalorder %v1996, 8
      %v2629 = vsel %vm1997, %v2457, 1.0
      %v2630 = vsel %vm1997, %v2467, 1.0
      %v2631 = vsel %vm1997, %v2477, 1.0
      %v2632 = vsel %vm1997, %v2487, 1.0
      %v2633 = vsel %vm1997, %v2497, 1.0
      %v2634 = vsel %vm1997, %v2507, 1.0
      %v2635 = vsel %vm1997, %v2517, 1.0
      %v2636 = vsel %vm1997, %v2527, 1.0
      %v2637 = vsel %vm1997, %v2537, 1.0
      %v2638 = vsel %vm1997, %v2547, 1.0
      %v2639 = vsel %vm1997, %v2557, 1.0
      %v2640 = vsel %vm1997, %v2567, 1.0
      %v2641 = vsel %vm1997, %v2577, 1.0
      %v2642 = vsel %vm1997, %v2587, 1.0
      %v2643 = vsel %vm1997, %v2597, 1.0
      %v2644 = vsel %vm1997, %v2607, 1.0
      %v2645 = vsel %vm1997, %v2617, 1.0
      %v2646 = vsel %vm1997, %v2627, 1.0
      %v2647 = vsel %vm2628, %v2133, %v2629
      %v2648 = vsel %vm2628, %v2143, %v2630
      %v2649 = vsel %vm2628, %v2153, %v2631
      %v2650 = vsel %vm2628, %v2163, %v2632
      %v2651 = vsel %vm2628, %v2173, %v2633
      %v2652 = vsel %vm2628, %v2183, %v2634
      %v2653 = vsel %vm2628, %v2193, %v2635
      %v2654 = vsel %vm2628, %v2203, %v2636
      %v2655 = vsel %vm2628, %v2213, %v2637
      %v2656 = vsel %vm2628, %v2223, %v2638
      %v2657 = vsel %vm2628, %v2233, %v2639
      %v2658 = vsel %vm2628, %v2243, %v2640
      %v2659 = vsel %vm2628, %v2253, %v2641
      %v2660 = vsel %vm2628, %v2263, %v2642
      %v2661 = vsel %vm2628, %v2273, %v2643
      %v2662 = vsel %vm2628, %v2283, %v2644
      %v2663 = vsel %vm2628, %v2293, %v2645
      %v2664 = vsel %vm2628, %v2303, %v2646
      %v2665 = vmul.f32 %v2016, %v2647
      %v2666 = vmul.f32 %v2017, %v2648
      %v2667 = vmul.f32 %v2018, %v2649
      %v2668 = vmul.f32 %v2019, %v2650
      %v2669 = vmul.f32 %v2020, %v2651
      %v2670 = vmul.f32 %v2021, %v2652
      %v2671 = vmul.f32 %v2022, %v2653
      %v2672 = vmul.f32 %v2023, %v2654
      %v2673 = vmul.f32 %v2024, %v2655
      %v2674 = vmul.f32 %v2025, %v2656
      %v2675 = vmul.f32 %v2026, %v2657
      %v2676 = vmul.f32 %v2027, %v2658
      %v2677 = vmul.f32 %v2028, %v2659
      %v2678 = vmul.f32 %v2029, %v2660
      %v2679 = vmul.f32 %v2030, %v2661
      %v2680 = vmul.f32 %v2031, %v2662
      %v2681 = vmul.f32 %v2032, %v2663
      %v2682 = vmul.f32 %v2033, %v2664
      %v2683 = vpack.c.bf16 %v2665, %v2665
      %v2684 = vpack.c.bf16 %v2666, %v2666
      %v2685 = vpack.c.bf16 %v2667, %v2667
      %v2686 = vpack.c.bf16 %v2668, %v2668
      %v2687 = vpack.c.bf16 %v2669, %v2669
      %v2688 = vpack.c.bf16 %v2670, %v2670
      %v2689 = vpack.c.bf16 %v2671, %v2671
      %v2690 = vpack.c.bf16 %v2672, %v2672
      %v2691 = vpack.c.bf16 %v2673, %v2673
      %v2692 = vpack.c.bf16 %v2674, %v2674
      %v2693 = vpack.c.bf16 %v2675, %v2675
      %v2694 = vpack.c.bf16 %v2676, %v2676
      %v2695 = vpack.c.bf16 %v2677, %v2677
      %v2696 = vpack.c.bf16 %v2678, %v2678
      %v2697 = vpack.c.bf16 %v2679, %v2679
      %v2698 = vpack.c.bf16 %v2680, %v2680
      %v2699 = vpack.c.bf16 %v2681, %v2681
      %v2700 = vpack.c.bf16 %v2682, %v2682
      %v2719 = vrot.slane %v2683, 3
      %v2720 = vrot.slane %v2684, 3
      %v2721 = vrot.slane %v2685, 3
      %v2722 = vrot.slane %v2686, 3
      %v2723 = vrot.slane %v2687, 3
      %v2724 = vrot.slane %v2688, 3
      %v2725 = vrot.slane %v2689, 3
      %v2726 = vrot.slane %v2690, 3
      %v2727 = vrot.slane %v2691, 3
      %v2728 = vrot.slane %v2692, 3
      %v2729 = vrot.slane %v2693, 3
      %v2730 = vrot.slane %v2694, 3
      %v2731 = vrot.slane %v2695, 3
      %v2732 = vrot.slane %v2696, 3
      %v2733 = vrot.slane %v2697, 3
      %v2734 = vrot.slane %v2698, 3
      %v2735 = vrot.slane %v2699, 3
      %v2736 = vrot.slane %v2700, 3
      %v2739 = vsel %vm367, %v2683, %v2719
      %v2741 = vsel %vm372, %v2683, %v2719
      %v2743 = vrot.slane %v2741, 1
      %v2744 = vsel %vm376, %v2683, %v2719
      %v2746 = vrot.slane %v2744, 2
      %v2747 = vsel %vm380, %v2683, %v2719
      %v2749 = vrot.slane %v2747, 3
      %v2752 = vsel %vm367, %v2684, %v2720
      %v2754 = vsel %vm372, %v2684, %v2720
      %v2756 = vrot.slane %v2754, 1
      %v2757 = vsel %vm376, %v2684, %v2720
      %v2759 = vrot.slane %v2757, 2
      %v2760 = vsel %vm380, %v2684, %v2720
      %v2762 = vrot.slane %v2760, 3
      %v2765 = vsel %vm367, %v2685, %v2721
      %v2767 = vsel %vm372, %v2685, %v2721
      %v2769 = vrot.slane %v2767, 1
      %v2770 = vsel %vm376, %v2685, %v2721
      %v2772 = vrot.slane %v2770, 2
      %v2773 = vsel %vm380, %v2685, %v2721
      %v2775 = vrot.slane %v2773, 3
      %v2778 = vsel %vm367, %v2686, %v2722
      %v2780 = vsel %vm372, %v2686, %v2722
      %v2782 = vrot.slane %v2780, 1
      %v2783 = vsel %vm376, %v2686, %v2722
      %v2785 = vrot.slane %v2783, 2
      %v2786 = vsel %vm380, %v2686, %v2722
      %v2788 = vrot.slane %v2786, 3
      %v2791 = vsel %vm367, %v2687, %v2723
      %v2793 = vsel %vm372, %v2687, %v2723
      %v2795 = vrot.slane %v2793, 1
      %v2796 = vsel %vm376, %v2687, %v2723
      %v2798 = vrot.slane %v2796, 2
      %v2799 = vsel %vm380, %v2687, %v2723
      %v2801 = vrot.slane %v2799, 3
      %v2804 = vsel %vm367, %v2688, %v2724
      %v2806 = vsel %vm372, %v2688, %v2724
      %v2808 = vrot.slane %v2806, 1
      %v2809 = vsel %vm376, %v2688, %v2724
      %v2811 = vrot.slane %v2809, 2
      %v2812 = vsel %vm380, %v2688, %v2724
      %v2814 = vrot.slane %v2812, 3
      %v2817 = vsel %vm367, %v2689, %v2725
      %v2819 = vsel %vm372, %v2689, %v2725
      %v2821 = vrot.slane %v2819, 1
      %v2822 = vsel %vm376, %v2689, %v2725
      %v2824 = vrot.slane %v2822, 2
      %v2825 = vsel %vm380, %v2689, %v2725
      %v2827 = vrot.slane %v2825, 3
      %v2830 = vsel %vm367, %v2690, %v2726
      %v2832 = vsel %vm372, %v2690, %v2726
      %v2834 = vrot.slane %v2832, 1
      %v2835 = vsel %vm376, %v2690, %v2726
      %v2837 = vrot.slane %v2835, 2
      %v2838 = vsel %vm380, %v2690, %v2726
      %v2840 = vrot.slane %v2838, 3
      %v2843 = vsel %vm367, %v2691, %v2727
      %v2845 = vsel %vm372, %v2691, %v2727
      %v2847 = vrot.slane %v2845, 1
      %v2848 = vsel %vm376, %v2691, %v2727
      %v2850 = vrot.slane %v2848, 2
      %v2851 = vsel %vm380, %v2691, %v2727
      %v2853 = vrot.slane %v2851, 3
      %v2856 = vsel %vm367, %v2692, %v2728
      %v2858 = vsel %vm372, %v2692, %v2728
      %v2860 = vrot.slane %v2858, 1
      %v2861 = vsel %vm376, %v2692, %v2728
      %v2863 = vrot.slane %v2861, 2
      %v2864 = vsel %vm380, %v2692, %v2728
      %v2866 = vrot.slane %v2864, 3
      %v2869 = vsel %vm367, %v2693, %v2729
      %v2871 = vsel %vm372, %v2693, %v2729
      %v2873 = vrot.slane %v2871, 1
      %v2874 = vsel %vm376, %v2693, %v2729
      %v2876 = vrot.slane %v2874, 2
      %v2877 = vsel %vm380, %v2693, %v2729
      %v2879 = vrot.slane %v2877, 3
      %v2882 = vsel %vm367, %v2694, %v2730
      %v2884 = vsel %vm372, %v2694, %v2730
      %v2886 = vrot.slane %v2884, 1
      %v2887 = vsel %vm376, %v2694, %v2730
      %v2889 = vrot.slane %v2887, 2
      %v2890 = vsel %vm380, %v2694, %v2730
      %v2892 = vrot.slane %v2890, 3
      %v2895 = vsel %vm367, %v2695, %v2731
      %v2897 = vsel %vm372, %v2695, %v2731
      %v2899 = vrot.slane %v2897, 1
      %v2900 = vsel %vm376, %v2695, %v2731
      %v2902 = vrot.slane %v2900, 2
      %v2903 = vsel %vm380, %v2695, %v2731
      %v2905 = vrot.slane %v2903, 3
      %v2908 = vsel %vm367, %v2696, %v2732
      %v2910 = vsel %vm372, %v2696, %v2732
      %v2912 = vrot.slane %v2910, 1
      %v2913 = vsel %vm376, %v2696, %v2732
      %v2915 = vrot.slane %v2913, 2
      %v2916 = vsel %vm380, %v2696, %v2732
      %v2918 = vrot.slane %v2916, 3
      %v2921 = vsel %vm367, %v2697, %v2733
      %v2923 = vsel %vm372, %v2697, %v2733
      %v2925 = vrot.slane %v2923, 1
      %v2926 = vsel %vm376, %v2697, %v2733
      %v2928 = vrot.slane %v2926, 2
      %v2929 = vsel %vm380, %v2697, %v2733
      %v2931 = vrot.slane %v2929, 3
      %v2934 = vsel %vm367, %v2698, %v2734
      %v2936 = vsel %vm372, %v2698, %v2734
      %v2938 = vrot.slane %v2936, 1
      %v2939 = vsel %vm376, %v2698, %v2734
      %v2941 = vrot.slane %v2939, 2
      %v2942 = vsel %vm380, %v2698, %v2734
      %v2944 = vrot.slane %v2942, 3
      %v2947 = vsel %vm367, %v2699, %v2735
      %v2949 = vsel %vm372, %v2699, %v2735
      %v2951 = vrot.slane %v2949, 1
      %v2952 = vsel %vm376, %v2699, %v2735
      %v2954 = vrot.slane %v2952, 2
      %v2955 = vsel %vm380, %v2699, %v2735
      %v2957 = vrot.slane %v2955, 3
      %v2960 = vsel %vm367, %v2700, %v2736
      %v2962 = vsel %vm372, %v2700, %v2736
      %v2964 = vrot.slane %v2962, 1
      %v2965 = vsel %vm376, %v2700, %v2736
      %v2967 = vrot.slane %v2965, 2
      %v2968 = vsel %vm380, %v2700, %v2736
      %v2970 = vrot.slane %v2968, 3
      %v2971 = vunpack.i.l.s16 %v2739
      %v2972 = vunpack.i.h.s16 %v2739
      %v2973 = vunpack.i.l.s16 %v2743
      %v2974 = vunpack.i.h.s16 %v2743
      %v2975 = vunpack.i.l.s16 %v2746
      %v2976 = vunpack.i.h.s16 %v2746
      %v2977 = vunpack.i.l.s16 %v2749
      %v2978 = vunpack.i.h.s16 %v2749
      %v2979 = vunpack.i.h.s16 %v2752
      %v2980 = vunpack.i.l.s16 %v2756
      %v2981 = vunpack.i.h.s16 %v2756
      %v2982 = vunpack.i.l.s16 %v2759
      %v2983 = vunpack.i.h.s16 %v2759
      %v2984 = vunpack.i.l.s16 %v2762
      %v2985 = vunpack.i.h.s16 %v2762
      %v2986 = vunpack.i.l.s16 %v2765
      %v2987 = vunpack.i.l.s16 %v2769
      %v2988 = vunpack.i.h.s16 %v2769
      %v2989 = vunpack.i.l.s16 %v2772
      %v2990 = vunpack.i.h.s16 %v2772
      %v2991 = vunpack.i.l.s16 %v2775
      %v2992 = vunpack.i.h.s16 %v2775
      %v2993 = vunpack.i.l.s16 %v2778
      %v2994 = vunpack.i.h.s16 %v2778
      %v2995 = vunpack.i.h.s16 %v2782
      %v2996 = vunpack.i.l.s16 %v2785
      %v2997 = vunpack.i.h.s16 %v2785
      %v2998 = vunpack.i.l.s16 %v2788
      %v2999 = vunpack.i.h.s16 %v2788
      %v3000 = vunpack.i.l.s16 %v2791
      %v3001 = vunpack.i.h.s16 %v2791
      %v3002 = vunpack.i.l.s16 %v2795
      %v3003 = vunpack.i.l.s16 %v2798
      %v3004 = vunpack.i.h.s16 %v2798
      %v3005 = vunpack.i.l.s16 %v2801
      %v3006 = vunpack.i.h.s16 %v2801
      %v3007 = vunpack.i.l.s16 %v2804
      %v3008 = vunpack.i.h.s16 %v2804
      %v3009 = vunpack.i.l.s16 %v2808
      %v3010 = vunpack.i.h.s16 %v2808
      %v3011 = vunpack.i.h.s16 %v2811
      %v3012 = vunpack.i.l.s16 %v2814
      %v3013 = vunpack.i.h.s16 %v2814
      %v3014 = vunpack.i.l.s16 %v2817
      %v3015 = vunpack.i.h.s16 %v2817
      %v3016 = vunpack.i.l.s16 %v2821
      %v3017 = vunpack.i.h.s16 %v2821
      %v3018 = vunpack.i.l.s16 %v2824
      %v3019 = vunpack.i.l.s16 %v2827
      %v3020 = vunpack.i.h.s16 %v2827
      %v3021 = vunpack.i.l.s16 %v2830
      %v3022 = vunpack.i.h.s16 %v2830
      %v3023 = vunpack.i.l.s16 %v2834
      %v3024 = vunpack.i.h.s16 %v2834
      %v3025 = vunpack.i.l.s16 %v2837
      %v3026 = vunpack.i.h.s16 %v2837
      %v3027 = vunpack.i.h.s16 %v2840
      %v3028 = vunpack.i.l.s16 %v2843
      %v3029 = vunpack.i.h.s16 %v2843
      %v3030 = vunpack.i.l.s16 %v2847
      %v3031 = vunpack.i.h.s16 %v2847
      %v3032 = vunpack.i.l.s16 %v2850
      %v3033 = vunpack.i.h.s16 %v2850
      %v3034 = vunpack.i.l.s16 %v2853
      %v3035 = vunpack.i.l.s16 %v2856
      %v3036 = vunpack.i.h.s16 %v2856
      %v3037 = vunpack.i.l.s16 %v2860
      %v3038 = vunpack.i.h.s16 %v2860
      %v3039 = vunpack.i.l.s16 %v2863
      %v3040 = vunpack.i.h.s16 %v2863
      %v3041 = vunpack.i.l.s16 %v2866
      %v3042 = vunpack.i.h.s16 %v2866
      %v3043 = vunpack.i.h.s16 %v2869
      %v3044 = vunpack.i.l.s16 %v2873
      %v3045 = vunpack.i.h.s16 %v2873
      %v3046 = vunpack.i.l.s16 %v2876
      %v3047 = vunpack.i.h.s16 %v2876
      %v3048 = vunpack.i.l.s16 %v2879
      %v3049 = vunpack.i.h.s16 %v2879
      %v3050 = vunpack.i.l.s16 %v2882
      %v3051 = vunpack.i.l.s16 %v2886
      %v3052 = vunpack.i.h.s16 %v2886
      %v3053 = vunpack.i.l.s16 %v2889
      %v3054 = vunpack.i.h.s16 %v2889
      %v3055 = vunpack.i.l.s16 %v2892
      %v3056 = vunpack.i.h.s16 %v2892
      %v3057 = vunpack.i.l.s16 %v2895
      %v3058 = vunpack.i.h.s16 %v2895
      %v3059 = vunpack.i.h.s16 %v2899
      %v3060 = vunpack.i.l.s16 %v2902
      %v3061 = vunpack.i.h.s16 %v2902
      %v3062 = vunpack.i.l.s16 %v2905
      %v3063 = vunpack.i.h.s16 %v2905
      %v3064 = vunpack.i.l.s16 %v2908
      %v3065 = vunpack.i.h.s16 %v2908
      %v3066 = vunpack.i.l.s16 %v2912
      %v3067 = vunpack.i.l.s16 %v2915
      %v3068 = vunpack.i.h.s16 %v2915
      %v3069 = vunpack.i.l.s16 %v2918
      %v3070 = vunpack.i.h.s16 %v2918
      %v3071 = vunpack.i.l.s16 %v2921
      %v3072 = vunpack.i.h.s16 %v2921
      %v3073 = vunpack.i.l.s16 %v2925
      %v3074 = vunpack.i.h.s16 %v2925
      %v3075 = vunpack.i.h.s16 %v2928
      %v3076 = vunpack.i.l.s16 %v2931
      %v3077 = vunpack.i.h.s16 %v2931
      %v3078 = vunpack.i.l.s16 %v2934
      %v3079 = vunpack.i.h.s16 %v2934
      %v3080 = vunpack.i.l.s16 %v2938
      %v3081 = vunpack.i.h.s16 %v2938
      %v3082 = vunpack.i.l.s16 %v2941
      %v3083 = vunpack.i.l.s16 %v2944
      %v3084 = vunpack.i.h.s16 %v2944
      %v3085 = vunpack.i.l.s16 %v2947
      %v3086 = vunpack.i.h.s16 %v2947
      %v3087 = vunpack.i.l.s16 %v2951
      %v3088 = vunpack.i.h.s16 %v2951
      %v3089 = vunpack.i.l.s16 %v2954
      %v3090 = vunpack.i.h.s16 %v2954
      %v3091 = vunpack.i.h.s16 %v2957
      %v3092 = vunpack.i.l.s16 %v2960
      %v3093 = vunpack.i.h.s16 %v2960
      %v3094 = vunpack.i.l.s16 %v2964
      %v3095 = vunpack.i.h.s16 %v2964
      %v3096 = vunpack.i.l.s16 %v2967
      %v3097 = vunpack.i.h.s16 %v2967
      %v3098 = vunpack.i.l.s16 %v2970
      %v3099 = vld [vmem:[%s3] sm:$0xf]
      %v3100 = vld [vmem:[%s3 + $0x4] sm:$0xf]
      %v3101 = vld [vmem:[%s3 + $0x8] sm:$0xf]
      %s3102 = scalar_lea.vmem %s3, 12
      %v3103 = vld [vmem:[%s3102] sm:$0xf]
      %v3104 = vld [vmem:[%s3102 + $0x4] sm:$0xf]
      %v3105 = vld [vmem:[%s3102 + $0x8] sm:$0xf]
      %v3106 = vpack.i.b16 %v2980, %v2979
      %v3107 = vpack.i.b16 %v2982, %v2981
      %v3108 = vpack.i.b16 %v2984, %v2983
      %v3109 = vpack.i.b16 %v2986, %v2985
      %v3110 = vpack.i.b16 %v2996, %v2995
      %v3111 = vpack.i.b16 %v2998, %v2997
      %v3112 = vpack.i.b16 %v3000, %v2999
      %v3113 = vpack.i.b16 %v3002, %v3001
      %v3114 = vpack.i.b16 %v3012, %v3011
      %v3115 = vpack.i.b16 %v3014, %v3013
      %v3116 = vpack.i.b16 %v3016, %v3015
      %v3117 = vpack.i.b16 %v3018, %v3017
      %v3118 = vpack.i.b16 %v3028, %v3027
      %v3119 = vpack.i.b16 %v3030, %v3029
      %v3120 = vpack.i.b16 %v3032, %v3031
      %v3121 = vpack.i.b16 %v3034, %v3033
      %v3122 = vpack.i.b16 %v3044, %v3043
      %v3123 = vpack.i.b16 %v3046, %v3045
      %v3124 = vpack.i.b16 %v3048, %v3047
      %v3125 = vpack.i.b16 %v3050, %v3049
      %v3126 = vpack.i.b16 %v3060, %v3059
      %v3127 = vpack.i.b16 %v3062, %v3061
      %v3128 = vpack.i.b16 %v3064, %v3063
      %v3129 = vpack.i.b16 %v3066, %v3065
      %v3130 = vpack.i.b16 %v3076, %v3075
      %v3131 = vpack.i.b16 %v3078, %v3077
      %v3132 = vpack.i.b16 %v3080, %v3079
      %v3133 = vpack.i.b16 %v3082, %v3081
      %v3134 = vpack.i.b16 %v3092, %v3091
      %v3135 = vpack.i.b16 %v3094, %v3093
      %v3136 = vpack.i.b16 %v3096, %v3095
      %v3137 = vpack.i.b16 %v3098, %v3097
      %3139 = vst [vmem:[#allocation1] ss:$9 sm:$0xff] %v3106
      %s3141 = scalar_lea.vmem [#allocation1], 1
      %3142 = vst [vmem:[%s3141] ss:$9 sm:$0xff] %v3107
      %s3144 = scalar_lea.vmem [#allocation1], 2
      %3145 = vst [vmem:[%s3144] ss:$9 sm:$0xff] %v3108
      %s3147 = scalar_lea.vmem [#allocation1], 3
      %3148 = vst [vmem:[%s3147] ss:$9 sm:$0xff] %v3109
      %s3150 = scalar_lea.vmem [#allocation1], 4
      %3151 = vst [vmem:[%s3150] ss:$9 sm:$0xff] %v3110
      %s3153 = scalar_lea.vmem [#allocation1], 5
      %3154 = vst [vmem:[%s3153] ss:$9 sm:$0xff] %v3111
      %s3156 = scalar_lea.vmem [#allocation1], 6
      %3157 = vst [vmem:[%s3156] ss:$9 sm:$0xff] %v3112
      %s3159 = scalar_lea.vmem [#allocation1], 7
      %3160 = vst [vmem:[%s3159] ss:$9 sm:$0xff] %v3113
      %v3161 = vld [vmem:[#allocation1] sm:$0xff]
      %3163 = vst [vmem:[#allocation1] ss:$9 sm:$0xff] %v3114
      %3165 = vst [vmem:[%s3141] ss:$9 sm:$0xff] %v3115
      %3167 = vst [vmem:[%s3144] ss:$9 sm:$0xff] %v3116
      %3169 = vst [vmem:[%s3147] ss:$9 sm:$0xff] %v3117
      %3171 = vst [vmem:[%s3150] ss:$9 sm:$0xff] %v3118
      %3173 = vst [vmem:[%s3153] ss:$9 sm:$0xff] %v3119
      %3175 = vst [vmem:[%s3156] ss:$9 sm:$0xff] %v3120
      %3177 = vst [vmem:[%s3159] ss:$9 sm:$0xff] %v3121
      %v3178 = vld [vmem:[#allocation1] sm:$0xff]
      %3180 = vst [vmem:[#allocation1] ss:$9 sm:$0xff] %v3122
      %3182 = vst [vmem:[%s3141] ss:$9 sm:$0xff] %v3123
      %3184 = vst [vmem:[%s3144] ss:$9 sm:$0xff] %v3124
      %3186 = vst [vmem:[%s3147] ss:$9 sm:$0xff] %v3125
      %3188 = vst [vmem:[%s3150] ss:$9 sm:$0xff] %v3126
      %3190 = vst [vmem:[%s3153] ss:$9 sm:$0xff] %v3127
      %3192 = vst [vmem:[%s3156] ss:$9 sm:$0xff] %v3128
      %3194 = vst [vmem:[%s3159] ss:$9 sm:$0xff] %v3129
      %v3195 = vld [vmem:[#allocation1] sm:$0xff]
      %3197 = vst [vmem:[#allocation1] ss:$9 sm:$0xff] %v3130
      %3199 = vst [vmem:[%s3141] ss:$9 sm:$0xff] %v3131
      %3201 = vst [vmem:[%s3144] ss:$9 sm:$0xff] %v3132
      %3203 = vst [vmem:[%s3147] ss:$9 sm:$0xff] %v3133
      %3205 = vst [vmem:[%s3150] ss:$9 sm:$0xff] %v3134
      %3207 = vst [vmem:[%s3153] ss:$9 sm:$0xff] %v3135
      %3209 = vst [vmem:[%s3156] ss:$9 sm:$0xff] %v3136
      %3211 = vst [vmem:[%s3159] ss:$9 sm:$0xff] %v3137
      %v3212 = vld [vmem:[#allocation1] sm:$0xff]
      %v3216 = vunpack.c.l.b16 %v3103
      %v3217 = vunpack.c.l.b16 %v3104
      %v3218 = vunpack.c.l.b16 %v3105
      %v3219 = vpack.c.b16 %v3217, %v3216
      %v3220 = vpack.c.b16 %v3218, %v3218
      %vm3222 = vcmask 195584
      %v3223 = vsel %vm3222, %v3161, 0
      %v3225 = vsel %vm3222, %v3178, 0
      %v3227 = vsel %vm3222, %v3195, 0
      %v3229 = vsel %vm3222, %v3212, 0
      %v3232 = vsel %vm1296, %v3220, 0
      %3234 = vmatpush.bf16.msra.mxu0 0
      %3235 = vmatpush.bf16.msra.mxu0 0
      %3236 = vmatpush.bf16.msra.mxu0 0
      %3237 = vmatpush.bf16.msra.mxu0 0
      %3238 = vmatpush.bf16.msra.mxu0 0
      %3239 = vmatpush.bf16.msra.mxu0 0
      %3240 = vmatpush.bf16.msra.mxu0 %v3232
      %3241 = vmatpush.bf16.msra.mxu0 %v3219
      %3242 = vmatmul.bf16.gmra.mxu0 %v3223
      %v3243 = vpop.f32.mrf.mxu0
      %v3244 = vadd.f32 0.0, %v3243
      %v3245 = vpop.f32.mrf.mxu0
      %v3246 = vadd.f32 0.0, %v3245
      %3247 = vmatmul.bf16.gmra.mxu0 %v3225
      %v3248 = vpop.f32.mrf.mxu0
      %v3249 = vadd.f32 0.0, %v3248
      %v3250 = vpop.f32.mrf.mxu0
      %v3251 = vadd.f32 0.0, %v3250
      %3252 = vmatmul.bf16.gmra.mxu0 %v3227
      %v3253 = vpop.f32.mrf.mxu0
      %v3254 = vadd.f32 0.0, %v3253
      %v3255 = vpop.f32.mrf.mxu0
      %v3256 = vadd.f32 0.0, %v3255
      %3257 = vmatmul.bf16.gmra.mxu0 %v3229
      %v3258 = vpop.f32.mrf.mxu0
      %v3259 = vadd.f32 0.0, %v3258
      %v3260 = vpop.f32.mrf.mxu0
      %v3261 = vadd.f32 0.0, %v3260
      %3262 = vdwg.mxu0
      %v3263 = vpack.i.b16 %v2972, %v2971
      %v3264 = vpack.i.b16 %v2974, %v2973
      %v3265 = vpack.i.b16 %v2976, %v2975
      %v3266 = vpack.i.b16 %v2978, %v2977
      %v3267 = vpack.i.b16 %v2988, %v2987
      %v3268 = vpack.i.b16 %v2990, %v2989
      %v3269 = vpack.i.b16 %v2992, %v2991
      %v3270 = vpack.i.b16 %v2994, %v2993
      %v3271 = vpack.i.b16 %v3004, %v3003
      %v3272 = vpack.i.b16 %v3006, %v3005
      %v3273 = vpack.i.b16 %v3008, %v3007
      %v3274 = vpack.i.b16 %v3010, %v3009
      %v3275 = vpack.i.b16 %v3020, %v3019
      %v3276 = vpack.i.b16 %v3022, %v3021
      %v3277 = vpack.i.b16 %v3024, %v3023
      %v3278 = vpack.i.b16 %v3026, %v3025
      %v3279 = vpack.i.b16 %v3036, %v3035
      %v3280 = vpack.i.b16 %v3038, %v3037
      %v3281 = vpack.i.b16 %v3040, %v3039
      %v3282 = vpack.i.b16 %v3042, %v3041
      %v3283 = vpack.i.b16 %v3052, %v3051
      %v3284 = vpack.i.b16 %v3054, %v3053
      %v3285 = vpack.i.b16 %v3056, %v3055
      %v3286 = vpack.i.b16 %v3058, %v3057
      %v3287 = vpack.i.b16 %v3068, %v3067
      %v3288 = vpack.i.b16 %v3070, %v3069
      %v3289 = vpack.i.b16 %v3072, %v3071
      %v3290 = vpack.i.b16 %v3074, %v3073
      %v3291 = vpack.i.b16 %v3084, %v3083
      %v3292 = vpack.i.b16 %v3086, %v3085
      %v3293 = vpack.i.b16 %v3088, %v3087
      %v3294 = vpack.i.b16 %v3090, %v3089
      %3296 = vst [vmem:[#allocation1] ss:$9 sm:$0xff] %v3263
      %s3298 = scalar_lea.vmem [#allocation1], 1
      %3299 = vst [vmem:[%s3298] ss:$9 sm:$0xff] %v3264
      %s3301 = scalar_lea.vmem [#allocation1], 2
      %3302 = vst [vmem:[%s3301] ss:$9 sm:$0xff] %v3265
      %s3304 = scalar_lea.vmem [#allocation1], 3
      %3305 = vst [vmem:[%s3304] ss:$9 sm:$0xff] %v3266
      %s3307 = scalar_lea.vmem [#allocation1], 4
      %3308 = vst [vmem:[%s3307] ss:$9 sm:$0xff] %v3267
      %s3310 = scalar_lea.vmem [#allocation1], 5
      %3311 = vst [vmem:[%s3310] ss:$9 sm:$0xff] %v3268
      %s3313 = scalar_lea.vmem [#allocation1], 6
      %3314 = vst [vmem:[%s3313] ss:$9 sm:$0xff] %v3269
      %s3316 = scalar_lea.vmem [#allocation1], 7
      %3317 = vst [vmem:[%s3316] ss:$9 sm:$0xff] %v3270
      %v3318 = vld [vmem:[#allocation1] sm:$0xff]
      %3320 = vst [vmem:[#allocation1] ss:$9 sm:$0xff] %v3271
      %3322 = vst [vmem:[%s3298] ss:$9 sm:$0xff] %v3272
      %3324 = vst [vmem:[%s3301] ss:$9 sm:$0xff] %v3273
      %3326 = vst [vmem:[%s3304] ss:$9 sm:$0xff] %v3274
      %3328 = vst [vmem:[%s3307] ss:$9 sm:$0xff] %v3275
      %3330 = vst [vmem:[%s3310] ss:$9 sm:$0xff] %v3276
      %3332 = vst [vmem:[%s3313] ss:$9 sm:$0xff] %v3277
      %3334 = vst [vmem:[%s3316] ss:$9 sm:$0xff] %v3278
      %v3335 = vld [vmem:[#allocation1] sm:$0xff]
      %3337 = vst [vmem:[#allocation1] ss:$9 sm:$0xff] %v3279
      %3339 = vst [vmem:[%s3298] ss:$9 sm:$0xff] %v3280
      %3341 = vst [vmem:[%s3301] ss:$9 sm:$0xff] %v3281
      %3343 = vst [vmem:[%s3304] ss:$9 sm:$0xff] %v3282
      %3345 = vst [vmem:[%s3307] ss:$9 sm:$0xff] %v3283
      %3347 = vst [vmem:[%s3310] ss:$9 sm:$0xff] %v3284
      %3349 = vst [vmem:[%s3313] ss:$9 sm:$0xff] %v3285
      %3351 = vst [vmem:[%s3316] ss:$9 sm:$0xff] %v3286
      %v3352 = vld [vmem:[#allocation1] sm:$0xff]
      %3354 = vst [vmem:[#allocation1] ss:$9 sm:$0xff] %v3287
      %3356 = vst [vmem:[%s3298] ss:$9 sm:$0xff] %v3288
      %3358 = vst [vmem:[%s3301] ss:$9 sm:$0xff] %v3289
      %3360 = vst [vmem:[%s3304] ss:$9 sm:$0xff] %v3290
      %3362 = vst [vmem:[%s3307] ss:$9 sm:$0xff] %v3291
      %3364 = vst [vmem:[%s3310] ss:$9 sm:$0xff] %v3292
      %3366 = vst [vmem:[%s3313] ss:$9 sm:$0xff] %v3293
      %3368 = vst [vmem:[%s3316] ss:$9 sm:$0xff] %v3294
      %v3369 = vld [vmem:[#allocation1] sm:$0xff]
      %v3373 = vunpack.c.l.b16 %v3099
      %v3374 = vunpack.c.l.b16 %v3100
      %v3375 = vunpack.c.l.b16 %v3101
      %v3376 = vpack.c.b16 %v3374, %v3373
      %v3377 = vpack.c.b16 %v3375, %v3375
      %v3379 = vsel %vm3222, %v3318, 0
      %v3381 = vsel %vm3222, %v3335, 0
      %v3383 = vsel %vm3222, %v3352, 0
      %v3385 = vsel %vm3222, %v3369, 0
      %v3388 = vsel %vm1296, %v3377, 0
      %3390 = vmatpush.bf16.msra.mxu0 0
      %3391 = vmatpush.bf16.msra.mxu0 0
      %3392 = vmatpush.bf16.msra.mxu0 0
      %3393 = vmatpush.bf16.msra.mxu0 0
      %3394 = vmatpush.bf16.msra.mxu0 0
      %3395 = vmatpush.bf16.msra.mxu0 0
      %3396 = vmatpush.bf16.msra.mxu0 %v3388
      %3397 = vmatpush.bf16.msra.mxu0 %v3376
      %3398 = vmatmul.bf16.gmra.mxu0 %v3379
      %v3399 = vpop.f32.mrf.mxu0
      %v3400 = vadd.f32 %v3244, %v3399
      %v3401 = vpop.f32.mrf.mxu0
      %v3402 = vadd.f32 %v3246, %v3401
      %3403 = vmatmul.bf16.gmra.mxu0 %v3381
      %v3404 = vpop.f32.mrf.mxu0
      %v3405 = vadd.f32 %v3249, %v3404
      %v3406 = vpop.f32.mrf.mxu0
      %v3407 = vadd.f32 %v3251, %v3406
      %3408 = vmatmul.bf16.gmra.mxu0 %v3383
      %v3409 = vpop.f32.mrf.mxu0
      %v3410 = vadd.f32 %v3254, %v3409
      %v3411 = vpop.f32.mrf.mxu0
      %v3412 = vadd.f32 %v3256, %v3411
      %3413 = vmatmul.bf16.gmra.mxu0 %v3385
      %v3414 = vpop.f32.mrf.mxu0
      %v3415 = vadd.f32 %v3259, %v3414
      %v3416 = vpop.f32.mrf.mxu0
      %v3417 = vadd.f32 %v3261, %v3416
      %3418 = vdwg.mxu0
      %v3419 = vld [vmem:[%s5] sm:$0x1]
      %v3421 = vperm.slane %v3419, 0
      %v3423 = vadd.f32 %v3400, %v3421
      %v3424 = vadd.f32 %v3402, %v3421
      %v3425 = vadd.f32 %v3405, %v3421
      %v3426 = vadd.f32 %v3407, %v3421
      %v3427 = vadd.f32 %v3410, %v3421
      %v3428 = vadd.f32 %v3412, %v3421
      %v3429 = vadd.f32 %v3415, %v3421
      %v3430 = vadd.f32 %v3417, %v3421
      %3431 = vxpose.xlu0.b32.start [1/16] %v3423, 128
      %3432 = vxpose.xlu0.b32.cont [2/16] %v3424, 128
      %3433 = vxpose.xlu0.b32.cont [3/16] %v3425, 128
      %3434 = vxpose.xlu0.b32.cont [4/16] %v3426, 128
      %3435 = vxpose.xlu0.b32.cont [5/16] %v3427, 128
      %3436 = vxpose.xlu0.b32.cont [6/16] %v3428, 128
      %3437 = vxpose.xlu0.b32.cont [7/16] %v3429, 128
      %3438 = vxpose.xlu0.b32.cont [8/16] %v3430, 128
      %3439 = vxpose.xlu0.b32.cont [9/16] 0.0, 128
      %3440 = vxpose.xlu0.b32.cont [10/16] 0.0, 128
      %3441 = vxpose.xlu0.b32.cont [11/16] 0.0, 128
      %3442 = vxpose.xlu0.b32.cont [12/16] 0.0, 128
      %3443 = vxpose.xlu0.b32.cont [13/16] 0.0, 128
      %3444 = vxpose.xlu0.b32.cont [14/16] 0.0, 128
      %3445 = vxpose.xlu0.b32.cont [15/16] 0.0, 128
      %3446 = vxpose.xlu0.b32.end [16/16] 0.0, 128
      %v3447 = vpop.trf.xlu0
      %v3448 = vpop.trf.xlu0
      %v3449 = vpop.trf.xlu0
      %v3450 = vpop.trf.xlu0
      %v3451 = vpop.trf.xlu0
      %v3452 = vpop.trf.xlu0
      %v3453 = vpop.trf.xlu0
      %v3454 = vpop.trf.xlu0
      %v3455 = vpop.trf.xlu0
      %v3456 = vpop.trf.xlu0
      %v3457 = vpop.trf.xlu0
      %v3458 = vpop.trf.xlu0
      %v3459 = vpop.trf.xlu0
      %v3460 = vpop.trf.xlu0
      %v3461 = vpop.trf.xlu0
      %v3462 = vpop.trf.xlu0
      %vm3463 = vcmask 523264
      %3464 = vst.msk [vmem:[%s269] sm:$0xff] %vm3463, %v3447
      %p3465 = scmp.lt.s32.totalorder %s17, 1
      %s3466 = scalar_select %p3465, %s17, 1
      %s3467 = smul.addr %s3466, 8
      %s3468 = scalar_lea.vmem %s6, %s3467
      // Predicated region
      $region45: #{res_down_block.1} parent=43 // pred_check
        %p3469 = pneg %p171
      $region46: #{res_down_block.1} parent=43 // pred_check_branch
        %3471 = sbr.rel (%p3469) target = $region48
      $region47: #{res_down_block.1} parent=43 // pred_region
        _
      $region48: #{res_down_block.1} parent=43 // pred_fallthru
        _
    $region44: #{res_down_block.1} parent=5 // pred_fallthru
      _
    %p3472 = scmp.le.s32.totalorder 2, %s12
    // Predicated region
    $region49: #{res_down_block.1} parent=5 // pred_check
      %p3473 = pneg %p3472
    $region50: #{res_down_block.1} parent=5 // pred_check_branch
      %3475 = sbr.rel (%p3473) target = $region52
    $region51: #{res_down_block.1} parent=5 // pred_region
      %s3476 = ssub.s32 %s12, 2
      // Predicated region
      $region53: #{res_down_block.1} parent=51 // pred_check
        %p3477 = pneg %p177
      $region54: #{res_down_block.1} parent=51 // pred_check_branch
        %3479 = sbr.rel (%p3477) target = $region56
      $region55: #{res_down_block.1} parent=51 // pred_region
        %p3480 = scmp.lt.s32.totalorder %s18, 1
        %s3481 = scalar_select %p3480, %s18, 1
        %s3482 = smul.addr %s3481, 8
        %s3483 = scalar_lea.vmem %s6, %s3482
      $region56: #{res_down_block.1} parent=51 // pred_fallthru
        _
    $region52: #{res_down_block.1} parent=5 // pred_fallthru
      _
  $region6: #{res_down_block.1} parent=0 // loop_footer
    %s16 = sadd.s32 1, %s12
  $region7: #{res_down_block.1} parent=0 // loop_footer_branch
    %11 = sbr.rel target = $region3
  $region8: #{res_down_block.1} parent=0 // loop_exit
    _

</llo_original>
